<compile_context>
chip_gen: v6e
topology: v6e:2x2x1
jax: 0.10.0
libtpu: 0.0.40
codegen_flags: <defaults>
</compile_context>

<pallas_src>
import functools

import jax
import jax.numpy as jnp
from jax.experimental import pallas as pl
from jax.experimental.pallas import tpu as pltpu


def _round_up(x, m):
    return ((x + m - 1) // m) * m


def _pick_tile(dim, pref, align):
    """Largest tile <= pref that divides `dim` and is `align`-aligned;
    falls back to the full dim (always a legal block size)."""
    if dim <= pref:
        return dim
    t = (pref // align) * align
    while t >= align:
        if dim % t == 0:
            return t
        t -= align
    return dim


# --------------------------------------------------------------------------
# Kernel 1: EmbeddingExtractor (backbone stand-in + fc + L2 normalize) fused
#           with the GhostVLAD cluster-assign projection (big-M matmul here
#           instead of tiny S-row matmuls in the head).
#   grid = (row tiles [parallel], H*W reduction tiles [arbitrary])
# --------------------------------------------------------------------------
def embed_kernel(x_ref, wb_ref, wf_ref, bf_ref, wa_ref, ba_ref,
                 emb_ref, sa_ref, acc_ref):
    # TODO(synk): resnet34() is undefined in the provided source; a single
    # linear projection (H*W -> 512) stands in for resnet(x_input).view(N,512).
    k = pl.program_id(1)

    @pl.when(k == 0)
    def _init():
        acc_ref[...] = jnp.zeros_like(acc_ref)

    acc_ref[...] += jnp.dot(x_ref[...], wb_ref[...],
                            preferred_element_type=jnp.float32)

    @pl.when(k == pl.num_programs(1) - 1)
    def _finalize():
        emb = jnp.dot(acc_ref[...].astype(jnp.bfloat16), wf_ref[...],
                      preferred_element_type=jnp.float32) + bf_ref[...]
        inv = jax.lax.rsqrt(
            jnp.maximum(jnp.sum(emb * emb, axis=-1, keepdims=True), 1e-24))
        embn = emb * inv                               # F.normalize(dim=-1)
        emb_ref[...] = embn.astype(emb_ref.dtype)      # lane-dense (Dpad=128k)
        # GhostVLAD 1x1-conv cluster logits on the normalized embedding
        # (ghost columns already dropped host-side; reference has no softmax).
        sa_ref[...] = (jnp.dot(embn.astype(jnp.bfloat16), wa_ref[...],
                               preferred_element_type=jnp.float32)
                       + ba_ref[...]).astype(sa_ref.dtype)


def run_embedder(x_flat, w_backbone, w_fc, b_fc, w_assign, b_assign,
                 *, row_tile=512, k_tile=1024):
    n, hw = x_flat.shape
    feat_dim = w_backbone.shape[1]
    d_pad = w_fc.shape[1]
    k_cl = w_assign.shape[1]
    tn = _pick_tile(n, row_tile, 16)       # bf16 packs 16 sublanes per vreg
    tk = _pick_tile(hw, k_tile, 128)       # lane-aligned reduction tile
    # NOTE: w_backbone is re-streamed once per row tile (index (k, 0)); the
    # large tn keeps that factor small. Bump pipeline_mode=pl.Buffered(3) on
    # its spec if the DMA shows up exposed on a profile.
    return pl.pallas_call(
        embed_kernel,
        out_shape=(jax.ShapeDtypeStruct((n, d_pad), jnp.bfloat16),
                   jax.ShapeDtypeStruct((n, k_cl), jnp.float32)),
        grid=(n // tn, hw // tk),
        in_specs=[
            pl.BlockSpec((tn, tk), lambda i, k: (i, k)),
            pl.BlockSpec((tk, feat_dim), lambda i, k: (k, 0)),
            pl.BlockSpec((feat_dim, d_pad), lambda i, k: (0, 0)),
            pl.BlockSpec((1, d_pad), lambda i, k: (0, 0)),
            pl.BlockSpec((d_pad, k_cl), lambda i, k: (0, 0)),
            pl.BlockSpec((1, k_cl), lambda i, k: (0, 0)),
        ],
        out_specs=(pl.BlockSpec((tn, d_pad), lambda i, k: (i, 0)),
                   pl.BlockSpec((tn, k_cl), lambda i, k: (i, 0))),
        scratch_shapes=[pltpu.VMEM((tn, feat_dim), jnp.float32)],
        compiler_params=pltpu.CompilerParams(
            dimension_semantics=("parallel", "arbitrary"),
            vmem_limit_bytes=64 * 1024 * 1024),
    )(x_flat, w_backbone, w_fc, b_fc, w_assign, b_assign)


# --------------------------------------------------------------------------
# Kernel 2: GhostVLAD aggregation + fc + BatchNorm1d + L2-normalize.
#   grid = (K tiles [arbitrary]) with an f32 (B, out_dim) accumulator; the
#   whole batch stays in one block (required for batch-stat BN).
# --------------------------------------------------------------------------
def vlad_head_kernel(x_ref, sa_ref, m_ref, c_ref, wfc_ref, bfc_ref,
                     g_ref, be_ref, h_ref, acc_ref, *, k_block):
    j = pl.program_id(0)

    @pl.when(j == 0)
    def _init():
        acc_ref[...] = jnp.zeros_like(acc_ref)

    x = x_ref[...]                                  # (B, S, Dp) bf16
    sa = sa_ref[...] * m_ref[...]                   # (B, tk, S) * (B, 1, S)
    ssum = jnp.sum(sa, axis=-1)                     # (B, tk)  lane reduce
    # Batched A @ X: per-sample (tk, S) @ (S, Dp), leading batch dim on both.
    agg = jax.lax.dot_general(
        sa.astype(jnp.bfloat16), x,
        dimension_numbers=(((2,), (1,)), ((0,), (0,))),
        preferred_element_type=jnp.float32)         # (B, tk, Dp)
    vlad = agg - ssum[:, :, None] * c_ref[...][None, :, :]
    inv = jax.lax.rsqrt(
        jnp.maximum(jnp.sum(vlad * vlad, axis=-1, keepdims=True), 1e-24))
    vlad = (vlad * inv).astype(jnp.bfloat16)        # F.normalize(dim=2)

    # fc contribution of this K tile: k_block is a small static constant and
    # each term is a well-shaped (B, Dp) @ (Dp, out) MXU matmul; accumulate in
    # registers and touch the VMEM accumulator once per grid step.
    part = jnp.dot(vlad[:, 0, :], wfc_ref[0], preferred_element_type=jnp.float32)
    for kk in range(1, k_block):
        part = part + jnp.dot(vlad[:, kk, :], wfc_ref[kk],
                              preferred_element_type=jnp.float32)
    acc_ref[...] += part

    @pl.when(j == pl.num_programs(0) - 1)
    def _finalize():
        h = acc_ref[...] + bfc_ref[...]
        # BatchNorm1d with training-mode batch statistics (biased variance).
        # TODO(synk): running-stat updates / eval mode not modeled; the stats
        # are only valid while the whole batch lives in this single block.
        mean = jnp.mean(h, axis=0, keepdims=True)
        var = jnp.mean((h - mean) ** 2, axis=0, keepdims=True)
        h = (h - mean) * jax.lax.rsqrt(var + 1e-5) * g_ref[...] + be_ref[...]
        h = h * jax.lax.rsqrt(
            jnp.maximum(jnp.sum(h * h, axis=-1, keepdims=True), 1e-24))
        h_ref[...] = h.astype(h_ref.dtype)          # F.normalize(dim=1)


def run_vlad_head(emb3, sa_kt, mask, centroids, w_fc_kdo, b_fc, gamma, beta,
                  *, k_tile=8):
    b, s, d_pad = emb3.shape
    k_cl, _, out_dim = w_fc_kdo.shape
    tk = _pick_tile(k_cl, k_tile, 8)      # K lives on the sublane axis here
    kernel = functools.partial(vlad_head_kernel, k_block=tk)
    return pl.pallas_call(
        kernel,
        out_shape=jax.ShapeDtypeStruct((b, out_dim), jnp.float32),
        grid=(k_cl // tk,),
        in_specs=[
            pl.BlockSpec((b, s, d_pad), lambda j: (0, 0, 0)),        # resident
            pl.BlockSpec((b, tk, s), lambda j: (0, j, 0)),           # K tile
            pl.BlockSpec((b, 1, s), lambda j: (0, 0, 0)),            # resident
            pl.BlockSpec((tk, d_pad), lambda j: (j, 0)),             # K tile
            pl.BlockSpec((tk, d_pad, out_dim), lambda j: (j, 0, 0)), # K tile
            pl.BlockSpec((1, out_dim), lambda j: (0, 0)),
            pl.BlockSpec((1, out_dim), lambda j: (0, 0)),
            pl.BlockSpec((1, out_dim), lambda j: (0, 0)),
        ],
        out_specs=pl.BlockSpec((b, out_dim), lambda j: (0, 0)),
        scratch_shapes=[pltpu.VMEM((b, out_dim), jnp.float32)],
        compiler_params=pltpu.CompilerParams(
            dimension_semantics=("arbitrary",),
            vmem_limit_bytes=64 * 1024 * 1024),
    )(emb3, sa_kt, mask, centroids, w_fc_kdo, b_fc, gamma, beta)


# --------------------------------------------------------------------------
# Kernel 3: classifier fc2, class-tiled "parallel" grid (megacore-shardable).
# --------------------------------------------------------------------------
def fc2_kernel(h_ref, w_ref, b_ref, o_ref):
    o_ref[...] = (jnp.dot(h_ref[...].astype(jnp.bfloat16), w_ref[...],
                          preferred_element_type=jnp.float32) + b_ref[...])


def run_fc2(h, w2, b2, *, class_tile=1024):
    b, out_dim = h.shape
    n_classes = w2.shape[1]
    tc = _pick_tile(n_classes, class_tile, 128)
    return pl.pallas_call(
        fc2_kernel,
        out_shape=jax.ShapeDtypeStruct((b, n_classes), jnp.float32),
        grid=(n_classes // tc,),
        in_specs=[
            pl.BlockSpec((b, out_dim), lambda j: (0, 0)),
            pl.BlockSpec((out_dim, tc), lambda j: (0, j)),
            pl.BlockSpec((1, tc), lambda j: (0, j)),
        ],
        out_specs=pl.BlockSpec((b, tc), lambda j: (0, j)),
        compiler_params=pltpu.CompilerParams(
            dimension_semantics=("parallel",),
            vmem_limit_bytes=64 * 1024 * 1024),
    )(h, w2, b2)


# --------------------------------------------------------------------------
# Full GhostVlad forward
# --------------------------------------------------------------------------
def ghost_vlad_forward(params, x, slice_mask):
    b, s, h, w = x.shape
    x_flat = x.reshape(b * s, h * w).astype(jnp.bfloat16)            # (N, H*W)

    emb, sa = run_embedder(x_flat, params["w_backbone"], params["w_emb_fc"],
                           params["b_emb_fc"], params["w_assign"],
                           params["b_assign"])        # (N, Dpad) bf16, (N, K) f32
    d_pad = emb.shape[-1]
    k_cl = params["centroids"].shape[0]

    emb3 = emb.reshape(b, s, d_pad)                                  # (B, S, Dp)
    # Layout plumbing (outside the kernels, tiny arrays): put K on the sublane
    # axis and S on the lane axis so the head's aggregation is a standard
    # leading-batch matmul and the K grid axis tiles cleanly.
    sa_kt = sa.reshape(b, s, k_cl).transpose(0, 2, 1)                # (B, K, S)
    mask = slice_mask.astype(jnp.float32).reshape(b, 1, s)           # (B, 1, S)

    h_desc = run_vlad_head(emb3, sa_kt, mask, params["centroids"],
                           params["w_fc_kdo"], params["b_fc"],
                           params["bn_gamma"], params["bn_beta"])    # (B, out)
    return run_fc2(h_desc, params["w_fc2"], params["b_fc2"])         # (B, C)


def make_params(key, *, hw, emb_dim, num_clusters, num_g_cl, alpha, out_dim,
                n_classes):
    ks = jax.random.split(key, 8)
    feat_dim = 512
    # Zero-pad the embedding dim to a lane-dense width. Exact: padded columns
    # of the embedding / centroids / assign / fc weights are identically zero,
    # so every norm, residual and matmul is unchanged.
    d_pad = _round_up(emb_dim, 128)

    # GhostVLAD init: init = normalize(randn(K+G, D)); conv.w = 2*alpha*init;
    # conv.b = -alpha*||init||; centroids = init[:K]
    init = jax.random.normal(ks[0], (num_clusters + num_g_cl, emb_dim), jnp.float32)
    init = init / jnp.maximum(
        jnp.sqrt(jnp.sum(init * init, axis=-1, keepdims=True)), 1e-12)
    w_conv = 2.0 * alpha * init                                      # (K+G, D)
    b_conv = -alpha * jnp.sqrt(jnp.sum(init * init, axis=-1))        # (K+G,)

    def pad_last(a, new):
        return jnp.pad(a, [(0, 0)] * (a.ndim - 1) + [(0, new - a.shape[-1])])

    w_emb_fc = 0.05 * jax.random.normal(ks[2], (feat_dim, emb_dim), jnp.float32)
    b_emb_fc = 0.01 * jax.random.normal(ks[3], (1, emb_dim), jnp.float32)
    w_assign = w_conv[:num_clusters].T                               # (D, K)
    centroids = init[:num_clusters]                                  # (K, D)
    w_fc = 0.02 * jax.random.normal(
        ks[4], (num_clusters * emb_dim, out_dim), jnp.float32)
    w_fc_kdo = w_fc.reshape(num_clusters, emb_dim, out_dim)          # (K, D, out)

    params = {
        # matmul weights live in bf16 (MXU-native, half the HBM bytes);
        # biases / BN params / centroids stay f32.
        "w_backbone": (0.02 * jax.random.normal(ks[1], (hw, feat_dim), jnp.float32)
                       ).astype(jnp.bfloat16),
        "w_emb_fc":   pad_last(w_emb_fc, d_pad).astype(jnp.bfloat16),  # (512, Dp)
        "b_emb_fc":   pad_last(b_emb_fc, d_pad),                       # (1, Dp)
        # drop ghost clusters up front (== soft_assign[:, :, :-G])
        "w_assign":   jnp.pad(w_assign, ((0, d_pad - emb_dim), (0, 0))
                              ).astype(jnp.bfloat16),                  # (Dp, K)
        "b_assign":   b_conv[:num_clusters].reshape(1, num_clusters),  # (1, K)
        "centroids":  pad_last(centroids, d_pad),                      # (K, Dp)
        "w_fc_kdo":   jnp.pad(w_fc_kdo,
                              ((0, 0), (0, d_pad - emb_dim), (0, 0))
                              ).astype(jnp.bfloat16),                  # (K, Dp, out)
        "b_fc":       0.01 * jax.random.normal(ks[5], (1, out_dim), jnp.float32),
        "bn_gamma":   jnp.ones((1, out_dim), jnp.float32),
        "bn_beta":    jnp.zeros((1, out_dim), jnp.float32),
        "w_fc2":      (0.05 * jax.random.normal(ks[6], (out_dim, n_classes),
                                                jnp.float32)).astype(jnp.bfloat16),
        "b_fc2":      0.01 * jax.random.normal(ks[7], (1, n_classes), jnp.float32),
    }
    return params


if __name__ == "__main__":
    B, S, H, W = 2, 4, 16, 16
    EMB_DIM = 32
    NUM_CLUSTERS, NUM_G_CL, ALPHA = 8, 2, 1.0
    OUT_DIM, N_CLASSES = 32, 10

    key = jax.random.PRNGKey(0)
    k_x, k_p = jax.random.split(key)

    x = jax.random.normal(k_x, (B, S, H, W), jnp.float32)
    slice_mask = jnp.array([[1.0, 1.0, 1.0, 0.0],
                            [1.0, 1.0, 0.0, 0.0]], jnp.float32)      # (B, S)

    params = make_params(k_p, hw=H * W, emb_dim=EMB_DIM,
                         num_clusters=NUM_CLUSTERS, num_g_cl=NUM_G_CL,
                         alpha=ALPHA, out_dim=OUT_DIM, n_classes=N_CLASSES)

    logits = jax.jit(ghost_vlad_forward)(params, x, slice_mask)
    logits = jax.block_until_ready(logits)
    assert logits.shape == (B, N_CLASSES)
    assert bool(jnp.all(jnp.isfinite(logits)))
    print("KERNEL_OK")
</pallas_src>

<mosaic_0001>
module attributes {stable_mosaic.version = 11 : i64} {
  func.func @embed_kernel(%arg0: i32, %arg1: i32, %arg2: memref<8x256xbf16, #tpu.memory_space<vmem>>, %arg3: memref<256x512xbf16, #tpu.memory_space<vmem>>, %arg4: memref<512x128xbf16, #tpu.memory_space<vmem>>, %arg5: memref<1x128xf32, #tpu.memory_space<vmem>>, %arg6: memref<128x8xbf16, #tpu.memory_space<vmem>>, %arg7: memref<1x8xf32, #tpu.memory_space<vmem>>, %arg8: memref<8x128xbf16, #tpu.memory_space<vmem>>, %arg9: memref<8x8xf32, #tpu.memory_space<vmem>>, %arg10: memref<8x512xf32, #tpu.memory_space<vmem>>) attributes {dimension_semantics = [#tpu.dimension_semantics<parallel>, #tpu.dimension_semantics<arbitrary>], iteration_bounds = array<i64: 1, 1>, scalar_prefetch = 0 : i64, scratch_operands = 1 : i64, tpu.core_type = #tpu.core_type<tc>, window_params = [{transform_indices = @transform_0, window_bounds = array<i64: 8, 256>}, {transform_indices = @transform_1, window_bounds = array<i64: 256, 512>}, {pipeline_mode = #tpu.pipeline_mode<synchronous>, transform_indices = @transform_2, window_bounds = array<i64: 512, 128>}, {pipeline_mode = #tpu.pipeline_mode<synchronous>, transform_indices = @transform_3, window_bounds = array<i64: 1, 128>}, {pipeline_mode = #tpu.pipeline_mode<synchronous>, transform_indices = @transform_4, window_bounds = array<i64: 128, 8>}, {pipeline_mode = #tpu.pipeline_mode<synchronous>, transform_indices = @transform_5, window_bounds = array<i64: 1, 8>}, {transform_indices = @transform_6, window_bounds = array<i64: 8, 128>}, {transform_indices = @transform_7, window_bounds = array<i64: 8, 8>}]} {
    %c0_i32 = arith.constant 0 : i32
    %0 = arith.cmpi eq, %arg1, %c0_i32 : i32
    %1 = arith.extui %0 : i1 to i32
    %c0_i32_0 = arith.constant 0 : i32
    %2 = arith.cmpi ne, %1, %c0_i32_0 : i32
    scf.if %2 {
      %cst_10 = arith.constant 0.000000e+00 : f32
      %12 = vector.broadcast %cst_10 : f32 to vector<8x512xf32>
      %c0_11 = arith.constant 0 : index
      %c0_12 = arith.constant 0 : index
      %13 = vector.load %arg10[%c0_11, %c0_12] : memref<8x512xf32, #tpu.memory_space<vmem>>, vector<8x512xf32>
      tpu.vector_store %arg10[%c0_11, %c0_12], %12 {strides = array<i32>} : memref<8x512xf32, #tpu.memory_space<vmem>>, vector<8x512xf32>,
    } else {
    }
    %c0 = arith.constant 0 : index
    %c0_1 = arith.constant 0 : index
    %3 = vector.load %arg10[%c0, %c0_1] : memref<8x512xf32, #tpu.memory_space<vmem>>, vector<8x512xf32>
    %c0_2 = arith.constant 0 : index
    %c0_3 = arith.constant 0 : index
    %4 = vector.load %arg2[%c0_2, %c0_3] : memref<8x256xbf16, #tpu.memory_space<vmem>>, vector<8x256xbf16>
    %c0_4 = arith.constant 0 : index
    %c0_5 = arith.constant 0 : index
    %5 = vector.load %arg3[%c0_4, %c0_5] : memref<256x512xbf16, #tpu.memory_space<vmem>>, vector<256x512xbf16>
    %cst = arith.constant dense<0.000000e+00> : vector<8x512xf32>
    %6 = tpu.matmul %4, %5, %cst {dimension_numbers = #tpu.dot_dimension_numbers<[1], [0], [0], [1], [0, 0, 1, 1], [], []>} : vector<8x256xbf16>, vector<256x512xbf16>, vector<8x512xf32> -> vector<8x512xf32>
    %7 = arith.addf %3, %6 : vector<8x512xf32>
    %c0_6 = arith.constant 0 : index
    %c0_7 = arith.constant 0 : index
    %8 = vector.load %arg10[%c0_6, %c0_7] : memref<8x512xf32, #tpu.memory_space<vmem>>, vector<8x512xf32>
    tpu.vector_store %arg10[%c0_6, %c0_7], %7 {strides = array<i32>} : memref<8x512xf32, #tpu.memory_space<vmem>>, vector<8x512xf32>,
    %c0_i32_8 = arith.constant 0 : i32
    %9 = arith.cmpi eq, %arg1, %c0_i32_8 : i32
    %10 = arith.extui %9 : i1 to i32
    %c0_i32_9 = arith.constant 0 : i32
    %11 = arith.cmpi ne, %10, %c0_i32_9 : i32
    scf.if %11 {
      %c0_10 = arith.constant 0 : index
      %c0_11 = arith.constant 0 : index
      %12 = vector.load %arg10[%c0_10, %c0_11] : memref<8x512xf32, #tpu.memory_space<vmem>>, vector<8x512xf32>
      %13 = arith.truncf %12 : vector<8x512xf32> to vector<8x512xbf16>
      %c0_12 = arith.constant 0 : index
      %c0_13 = arith.constant 0 : index
      %14 = vector.load %arg4[%c0_12, %c0_13] : memref<512x128xbf16, #tpu.memory_space<vmem>>, vector<512x128xbf16>
      %cst_14 = arith.constant dense<0.000000e+00> : vector<8x128xf32>
      %15 = tpu.matmul %13, %14, %cst_14 {dimension_numbers = #tpu.dot_dimension_numbers<[1], [0], [0], [1], [0, 0, 1, 1], [], []>} : vector<8x512xbf16>, vector<512x128xbf16>, vector<8x128xf32> -> vector<8x128xf32>
      %c0_15 = arith.constant 0 : index
      %c0_16 = arith.constant 0 : index
      %16 = vector.load %arg5[%c0_15, %c0_16] : memref<1x128xf32, #tpu.memory_space<vmem>>, vector<1x128xf32>
      %17 = vector.broadcast %16 : vector<1x128xf32> to vector<8x128xf32>
      %18 = arith.addf %15, %17 : vector<8x128xf32>
      %19 = arith.mulf %18, %18 : vector<8x128xf32>
      %cst_17 = arith.constant dense<0.000000e+00> : vector<8xf32>
      %20 = vector.multi_reduction <add>, %19, %cst_17 [1] : vector<8x128xf32> to vector<8xf32>
      %21 = vector.shape_cast %20 : vector<8xf32> to vector<8x1xf32>
      %cst_18 = arith.constant 1.000000e-24 : f32
      %22 = vector.broadcast %cst_18 : f32 to vector<8x1xf32>
      %23 = arith.maximumf %21, %22 : vector<8x1xf32>
      %24 = math.rsqrt %23 : vector<8x1xf32>
      %25 = vector.broadcast %24 : vector<8x1xf32> to vector<8x128xf32>
      %26 = arith.mulf %18, %25 : vector<8x128xf32>
      %27 = arith.truncf %26 : vector<8x128xf32> to vector<8x128xbf16>
      %c0_19 = arith.constant 0 : index
      %c0_20 = arith.constant 0 : index
      %28 = vector.load %arg8[%c0_19, %c0_20] : memref<8x128xbf16, #tpu.memory_space<vmem>>, vector<8x128xbf16>
      tpu.vector_store %arg8[%c0_19, %c0_20], %27 {strides = array<i32>} : memref<8x128xbf16, #tpu.memory_space<vmem>>, vector<8x128xbf16>,
      %29 = arith.truncf %26 : vector<8x128xf32> to vector<8x128xbf16>
      %c0_21 = arith.constant 0 : index
      %c0_22 = arith.constant 0 : index
      %30 = vector.load %arg6[%c0_21, %c0_22] : memref<128x8xbf16, #tpu.memory_space<vmem>>, vector<128x8xbf16>
      %cst_23 = arith.constant dense<0.000000e+00> : vector<8x8xf32>
      %31 = tpu.matmul %29, %30, %cst_23 {dimension_numbers = #tpu.dot_dimension_numbers<[1], [0], [0], [1], [0, 0, 1, 1], [], []>} : vector<8x128xbf16>, vector<128x8xbf16>, vector<8x8xf32> -> vector<8x8xf32>
      %c0_24 = arith.constant 0 : index
      %c0_25 = arith.constant 0 : index
      %32 = vector.load %arg7[%c0_24, %c0_25] : memref<1x8xf32, #tpu.memory_space<vmem>>, vector<1x8xf32>
      %33 = vector.broadcast %32 : vector<1x8xf32> to vector<8x8xf32>
      %34 = arith.addf %31, %33 : vector<8x8xf32>
      %c0_26 = arith.constant 0 : index
      %c0_27 = arith.constant 0 : index
      %35 = vector.load %arg9[%c0_26, %c0_27] : memref<8x8xf32, #tpu.memory_space<vmem>>, vector<8x8xf32>
      tpu.vector_store %arg9[%c0_26, %c0_27], %34 {strides = array<i32>} : memref<8x8xf32, #tpu.memory_space<vmem>>, vector<8x8xf32>,
    } else {
    }
    return
  }
  func.func @transform_0(%arg0: i32, %arg1: i32) -> (i32, i32) {
    %c0_i32 = arith.constant 0 : i32
    return %arg0, %arg1 : i32, i32
  }
  func.func @transform_1(%arg0: i32, %arg1: i32) -> (i32, i32) {
    %c0_i32 = arith.constant 0 : i32
    %c0_i32_0 = arith.constant 0 : i32
    return %arg1, %c0_i32 : i32, i32
  }
  func.func @transform_2(%arg0: i32, %arg1: i32) -> (i32, i32) {
    %c0_i32 = arith.constant 0 : i32
    %c0_i32_0 = arith.constant 0 : i32
    %c0_i32_1 = arith.constant 0 : i32
    return %c0_i32, %c0_i32_0 : i32, i32
  }
  func.func @transform_3(%arg0: i32, %arg1: i32) -> (i32, i32) {
    %c0_i32 = arith.constant 0 : i32
    %c0_i32_0 = arith.constant 0 : i32
    %c0_i32_1 = arith.constant 0 : i32
    return %c0_i32, %c0_i32_0 : i32, i32
  }
  func.func @transform_4(%arg0: i32, %arg1: i32) -> (i32, i32) {
    %c0_i32 = arith.constant 0 : i32
    %c0_i32_0 = arith.constant 0 : i32
    %c0_i32_1 = arith.constant 0 : i32
    return %c0_i32, %c0_i32_0 : i32, i32
  }
  func.func @transform_5(%arg0: i32, %arg1: i32) -> (i32, i32) {
    %c0_i32 = arith.constant 0 : i32
    %c0_i32_0 = arith.constant 0 : i32
    %c0_i32_1 = arith.constant 0 : i32
    return %c0_i32, %c0_i32_0 : i32, i32
  }
  func.func @transform_6(%arg0: i32, %arg1: i32) -> (i32, i32) {
    %c0_i32 = arith.constant 0 : i32
    %c0_i32_0 = arith.constant 0 : i32
    return %arg0, %c0_i32 : i32, i32
  }
  func.func @transform_7(%arg0: i32, %arg1: i32) -> (i32, i32) {
    %c0_i32 = arith.constant 0 : i32
    %c0_i32_0 = arith.constant 0 : i32
    return %arg0, %c0_i32 : i32, i32
  }
}

module attributes {stable_mosaic.version = 11 : i64} {
  func.func @vlad_head_kernel(%arg0: i32, %arg1: memref<2x4x128xbf16, #tpu.memory_space<vmem>>, %arg2: memref<2x8x4xf32, #tpu.memory_space<vmem>>, %arg3: memref<2x1x4xf32, #tpu.memory_space<vmem>>, %arg4: memref<8x128xf32, #tpu.memory_space<vmem>>, %arg5: memref<8x128x32xbf16, #tpu.memory_space<vmem>>, %arg6: memref<1x32xf32, #tpu.memory_space<vmem>>, %arg7: memref<1x32xf32, #tpu.memory_space<vmem>>, %arg8: memref<1x32xf32, #tpu.memory_space<vmem>>, %arg9: memref<2x32xf32, #tpu.memory_space<vmem>>, %arg10: memref<2x32xf32, #tpu.memory_space<vmem>>) attributes {dimension_semantics = [#tpu.dimension_semantics<arbitrary>], iteration_bounds = array<i64: 1>, scalar_prefetch = 0 : i64, scratch_operands = 1 : i64, tpu.core_type = #tpu.core_type<tc>, window_params = [{pipeline_mode = #tpu.pipeline_mode<synchronous>, transform_indices = @transform_0, window_bounds = array<i64: 2, 4, 128>}, {transform_indices = @transform_1, window_bounds = array<i64: 2, 8, 4>}, {pipeline_mode = #tpu.pipeline_mode<synchronous>, transform_indices = @transform_2, window_bounds = array<i64: 2, 1, 4>}, {transform_indices = @transform_3, window_bounds = array<i64: 8, 128>}, {transform_indices = @transform_4, window_bounds = array<i64: 8, 128, 32>}, {pipeline_mode = #tpu.pipeline_mode<synchronous>, transform_indices = @transform_5, window_bounds = array<i64: 1, 32>}, {pipeline_mode = #tpu.pipeline_mode<synchronous>, transform_indices = @transform_6, window_bounds = array<i64: 1, 32>}, {pipeline_mode = #tpu.pipeline_mode<synchronous>, transform_indices = @transform_7, window_bounds = array<i64: 1, 32>}, {pipeline_mode = #tpu.pipeline_mode<synchronous>, transform_indices = @transform_8, window_bounds = array<i64: 2, 32>}]} {
    %c0_i32 = arith.constant 0 : i32
    %0 = arith.cmpi eq, %arg0, %c0_i32 : i32
    %1 = arith.extui %0 : i1 to i32
    %c0_i32_0 = arith.constant 0 : i32
    %2 = arith.cmpi ne, %1, %c0_i32_0 : i32
    scf.if %2 {
      %cst_45 = arith.constant 0.000000e+00 : f32
      %80 = vector.broadcast %cst_45 : f32 to vector<2x32xf32>
      %c0_46 = arith.constant 0 : index
      %c0_47 = arith.constant 0 : index
      %81 = vector.load %arg10[%c0_46, %c0_47] : memref<2x32xf32, #tpu.memory_space<vmem>>, vector<2x32xf32>
      tpu.vector_store %arg10[%c0_46, %c0_47], %80 {strides = array<i32>} : memref<2x32xf32, #tpu.memory_space<vmem>>, vector<2x32xf32>,
    } else {
    }
    %c0 = arith.constant 0 : index
    %c0_1 = arith.constant 0 : index
    %c0_2 = arith.constant 0 : index
    %3 = vector.load %arg1[%c0, %c0_1, %c0_2] : memref<2x4x128xbf16, #tpu.memory_space<vmem>>, vector<2x4x128xbf16>
    %c0_3 = arith.constant 0 : index
    %c0_4 = arith.constant 0 : index
    %c0_5 = arith.constant 0 : index
    %4 = vector.load %arg2[%c0_3, %c0_4, %c0_5] : memref<2x8x4xf32, #tpu.memory_space<vmem>>, vector<2x8x4xf32>
    %c0_6 = arith.constant 0 : index
    %c0_7 = arith.constant 0 : index
    %c0_8 = arith.constant 0 : index
    %5 = vector.load %arg3[%c0_6, %c0_7, %c0_8] : memref<2x1x4xf32, #tpu.memory_space<vmem>>, vector<2x1x4xf32>
    %6 = vector.broadcast %5 : vector<2x1x4xf32> to vector<2x8x4xf32>
    %7 = arith.mulf %4, %6 : vector<2x8x4xf32>
    %cst = arith.constant dense<0.000000e+00> : vector<2x8xf32>
    %8 = vector.multi_reduction <add>, %7, %cst [2] : vector<2x8x4xf32> to vector<2x8xf32>
    %9 = arith.truncf %7 : vector<2x8x4xf32> to vector<2x8x4xbf16>
    %cst_9 = arith.constant dense<0.000000e+00> : vector<2x8x128xf32>
    %10 = tpu.matmul %9, %3, %cst_9 {dimension_numbers = #tpu.dot_dimension_numbers<[2], [1], [1], [2], [0, 0, 0, 1, 1, 2], [0], [0]>} : vector<2x8x4xbf16>, vector<2x4x128xbf16>, vector<2x8x128xf32> -> vector<2x8x128xf32>
    %11 = vector.shape_cast %8 : vector<2x8xf32> to vector<2x8x1xf32>
    %c0_10 = arith.constant 0 : index
    %c0_11 = arith.constant 0 : index
    %12 = vector.load %arg4[%c0_10, %c0_11] : memref<8x128xf32, #tpu.memory_space<vmem>>, vector<8x128xf32>
    %13 = vector.shape_cast %12 : vector<8x128xf32> to vector<1x8x128xf32>
    %14 = vector.broadcast %11 : vector<2x8x1xf32> to vector<2x8x128xf32>
    %15 = vector.broadcast %13 : vector<1x8x128xf32> to vector<2x8x128xf32>
    %16 = arith.mulf %14, %15 : vector<2x8x128xf32>
    %17 = arith.subf %10, %16 : vector<2x8x128xf32>
    %18 = arith.mulf %17, %17 : vector<2x8x128xf32>
    %cst_12 = arith.constant dense<0.000000e+00> : vector<2x8xf32>
    %19 = vector.multi_reduction <add>, %18, %cst_12 [2] : vector<2x8x128xf32> to vector<2x8xf32>
    %20 = vector.shape_cast %19 : vector<2x8xf32> to vector<2x8x1xf32>
    %cst_13 = arith.constant 1.000000e-24 : f32
    %21 = vector.broadcast %cst_13 : f32 to vector<2x8x1xf32>
    %22 = arith.maximumf %20, %21 : vector<2x8x1xf32>
    %23 = math.rsqrt %22 : vector<2x8x1xf32>
    %24 = vector.broadcast %23 : vector<2x8x1xf32> to vector<2x8x128xf32>
    %25 = arith.mulf %17, %24 : vector<2x8x128xf32>
    %26 = arith.truncf %25 : vector<2x8x128xf32> to vector<2x8x128xbf16>
    %27 = vector.extract_strided_slice %26 {offsets = [0, 0, 0], sizes = [2, 1, 128], strides = [1, 1, 1]} : vector<2x8x128xbf16> to vector<2x1x128xbf16>
    %28 = vector.shape_cast %27 : vector<2x1x128xbf16> to vector<2x128xbf16>
    %c0_14 = arith.constant 0 : index
    %c0_15 = arith.constant 0 : index
    %c0_16 = arith.constant 0 : index
    %29 = vector.load %arg5[%c0_14, %c0_15, %c0_16] : memref<8x128x32xbf16, #tpu.memory_space<vmem>>, vector<1x128x32xbf16>
    %30 = vector.shape_cast %29 : vector<1x128x32xbf16> to vector<128x32xbf16>
    %cst_17 = arith.constant dense<0.000000e+00> : vector<2x32xf32>
    %31 = tpu.matmul %28, %30, %cst_17 {dimension_numbers = #tpu.dot_dimension_numbers<[1], [0], [0], [1], [0, 0, 1, 1], [], []>} : vector<2x128xbf16>, vector<128x32xbf16>, vector<2x32xf32> -> vector<2x32xf32>
    %32 = vector.extract_strided_slice %26 {offsets = [0, 1, 0], sizes = [2, 1, 128], strides = [1, 1, 1]} : vector<2x8x128xbf16> to vector<2x1x128xbf16>
    %33 = vector.shape_cast %32 : vector<2x1x128xbf16> to vector<2x128xbf16>
    %c1 = arith.constant 1 : index
    %c0_18 = arith.constant 0 : index
    %c0_19 = arith.constant 0 : index
    %34 = vector.load %arg5[%c1, %c0_18, %c0_19] : memref<8x128x32xbf16, #tpu.memory_space<vmem>>, vector<1x128x32xbf16>
    %35 = vector.shape_cast %34 : vector<1x128x32xbf16> to vector<128x32xbf16>
    %cst_20 = arith.constant dense<0.000000e+00> : vector<2x32xf32>
    %36 = tpu.matmul %33, %35, %cst_20 {dimension_numbers = #tpu.dot_dimension_numbers<[1], [0], [0], [1], [0, 0, 1, 1], [], []>} : vector<2x128xbf16>, vector<128x32xbf16>, vector<2x32xf32> -> vector<2x32xf32>
    %37 = arith.addf %31, %36 : vector<2x32xf32>
    %38 = vector.extract_strided_slice %26 {offsets = [0, 2, 0], sizes = [2, 1, 128], strides = [1, 1, 1]} : vector<2x8x128xbf16> to vector<2x1x128xbf16>
    %39 = vector.shape_cast %38 : vector<2x1x128xbf16> to vector<2x128xbf16>
    %c2 = arith.constant 2 : index
    %c0_21 = arith.constant 0 : index
    %c0_22 = arith.constant 0 : index
    %40 = vector.load %arg5[%c2, %c0_21, %c0_22] : memref<8x128x32xbf16, #tpu.memory_space<vmem>>, vector<1x128x32xbf16>
    %41 = vector.shape_cast %40 : vector<1x128x32xbf16> to vector<128x32xbf16>
    %cst_23 = arith.constant dense<0.000000e+00> : vector<2x32xf32>
    %42 = tpu.matmul %39, %41, %cst_23 {dimension_numbers = #tpu.dot_dimension_numbers<[1], [0], [0], [1], [0, 0, 1, 1], [], []>} : vector<2x128xbf16>, vector<128x32xbf16>, vector<2x32xf32> -> vector<2x32xf32>
    %43 = arith.addf %37, %42 : vector<2x32xf32>
    %44 = vector.extract_strided_slice %26 {offsets = [0, 3, 0], sizes = [2, 1, 128], strides = [1, 1, 1]} : vector<2x8x128xbf16> to vector<2x1x128xbf16>
    %45 = vector.shape_cast %44 : vector<2x1x128xbf16> to vector<2x128xbf16>
    %c3 = arith.constant 3 : index
    %c0_24 = arith.constant 0 : index
    %c0_25 = arith.constant 0 : index
    %46 = vector.load %arg5[%c3, %c0_24, %c0_25] : memref<8x128x32xbf16, #tpu.memory_space<vmem>>, vector<1x128x32xbf16>
    %47 = vector.shape_cast %46 : vector<1x128x32xbf16> to vector<128x32xbf16>
    %cst_26 = arith.constant dense<0.000000e+00> : vector<2x32xf32>
    %48 = tpu.matmul %45, %47, %cst_26 {dimension_numbers = #tpu.dot_dimension_numbers<[1], [0], [0], [1], [0, 0, 1, 1], [], []>} : vector<2x128xbf16>, vector<128x32xbf16>, vector<2x32xf32> -> vector<2x32xf32>
    %49 = arith.addf %43, %48 : vector<2x32xf32>
    %50 = vector.extract_strided_slice %26 {offsets = [0, 4, 0], sizes = [2, 1, 128], strides = [1, 1, 1]} : vector<2x8x128xbf16> to vector<2x1x128xbf16>
    %51 = vector.shape_cast %50 : vector<2x1x128xbf16> to vector<2x128xbf16>
    %c4 = arith.constant 4 : index
    %c0_27 = arith.constant 0 : index
    %c0_28 = arith.constant 0 : index
    %52 = vector.load %arg5[%c4, %c0_27, %c0_28] : memref<8x128x32xbf16, #tpu.memory_space<vmem>>, vector<1x128x32xbf16>
    %53 = vector.shape_cast %52 : vector<1x128x32xbf16> to vector<128x32xbf16>
    %cst_29 = arith.constant dense<0.000000e+00> : vector<2x32xf32>
    %54 = tpu.matmul %51, %53, %cst_29 {dimension_numbers = #tpu.dot_dimension_numbers<[1], [0], [0], [1], [0, 0, 1, 1], [], []>} : vector<2x128xbf16>, vector<128x32xbf16>, vector<2x32xf32> -> vector<2x32xf32>
    %55 = arith.addf %49, %54 : vector<2x32xf32>
    %56 = vector.extract_strided_slice %26 {offsets = [0, 5, 0], sizes = [2, 1, 128], strides = [1, 1, 1]} : vector<2x8x128xbf16> to vector<2x1x128xbf16>
    %57 = vector.shape_cast %56 : vector<2x1x128xbf16> to vector<2x128xbf16>
    %c5 = arith.constant 5 : index
    %c0_30 = arith.constant 0 : index
    %c0_31 = arith.constant 0 : index
    %58 = vector.load %arg5[%c5, %c0_30, %c0_31] : memref<8x128x32xbf16, #tpu.memory_space<vmem>>, vector<1x128x32xbf16>
    %59 = vector.shape_cast %58 : vector<1x128x32xbf16> to vector<128x32xbf16>
    %cst_32 = arith.constant dense<0.000000e+00> : vector<2x32xf32>
    %60 = tpu.matmul %57, %59, %cst_32 {dimension_numbers = #tpu.dot_dimension_numbers<[1], [0], [0], [1], [0, 0, 1, 1], [], []>} : vector<2x128xbf16>, vector<128x32xbf16>, vector<2x32xf32> -> vector<2x32xf32>
    %61 = arith.addf %55, %60 : vector<2x32xf32>
    %62 = vector.extract_strided_slice %26 {offsets = [0, 6, 0], sizes = [2, 1, 128], strides = [1, 1, 1]} : vector<2x8x128xbf16> to vector<2x1x128xbf16>
    %63 = vector.shape_cast %62 : vector<2x1x128xbf16> to vector<2x128xbf16>
    %c6 = arith.constant 6 : index
    %c0_33 = arith.constant 0 : index
    %c0_34 = arith.constant 0 : index
    %64 = vector.load %arg5[%c6, %c0_33, %c0_34] : memref<8x128x32xbf16, #tpu.memory_space<vmem>>, vector<1x128x32xbf16>
    %65 = vector.shape_cast %64 : vector<1x128x32xbf16> to vector<128x32xbf16>
    %cst_35 = arith.constant dense<0.000000e+00> : vector<2x32xf32>
    %66 = tpu.matmul %63, %65, %cst_35 {dimension_numbers = #tpu.dot_dimension_numbers<[1], [0], [0], [1], [0, 0, 1, 1], [], []>} : vector<2x128xbf16>, vector<128x32xbf16>, vector<2x32xf32> -> vector<2x32xf32>
    %67 = arith.addf %61, %66 : vector<2x32xf32>
    %68 = vector.extract_strided_slice %26 {offsets = [0, 7, 0], sizes = [2, 1, 128], strides = [1, 1, 1]} : vector<2x8x128xbf16> to vector<2x1x128xbf16>
    %69 = vector.shape_cast %68 : vector<2x1x128xbf16> to vector<2x128xbf16>
    %c7 = arith.constant 7 : index
    %c0_36 = arith.constant 0 : index
    %c0_37 = arith.constant 0 : index
    %70 = vector.load %arg5[%c7, %c0_36, %c0_37] : memref<8x128x32xbf16, #tpu.memory_space<vmem>>, vector<1x128x32xbf16>
    %71 = vector.shape_cast %70 : vector<1x128x32xbf16> to vector<128x32xbf16>
    %cst_38 = arith.constant dense<0.000000e+00> : vector<2x32xf32>
    %72 = tpu.matmul %69, %71, %cst_38 {dimension_numbers = #tpu.dot_dimension_numbers<[1], [0], [0], [1], [0, 0, 1, 1], [], []>} : vector<2x128xbf16>, vector<128x32xbf16>, vector<2x32xf32> -> vector<2x32xf32>
    %73 = arith.addf %67, %72 : vector<2x32xf32>
    %c0_39 = arith.constant 0 : index
    %c0_40 = arith.constant 0 : index
    %74 = vector.load %arg10[%c0_39, %c0_40] : memref<2x32xf32, #tpu.memory_space<vmem>>, vector<2x32xf32>
    %75 = arith.addf %74, %73 : vector<2x32xf32>
    %c0_41 = arith.constant 0 : index
    %c0_42 = arith.constant 0 : index
    %76 = vector.load %arg10[%c0_41, %c0_42] : memref<2x32xf32, #tpu.memory_space<vmem>>, vector<2x32xf32>
    tpu.vector_store %arg10[%c0_41, %c0_42], %75 {strides = array<i32>} : memref<2x32xf32, #tpu.memory_space<vmem>>, vector<2x32xf32>,
    %c0_i32_43 = arith.constant 0 : i32
    %77 = arith.cmpi eq, %arg0, %c0_i32_43 : i32
    %78 = arith.extui %77 : i1 to i32
    %c0_i32_44 = arith.constant 0 : i32
    %79 = arith.cmpi ne, %78, %c0_i32_44 : i32
    scf.if %79 {
      %c0_45 = arith.constant 0 : index
      %c0_46 = arith.constant 0 : index
      %80 = vector.load %arg10[%c0_45, %c0_46] : memref<2x32xf32, #tpu.memory_space<vmem>>, vector<2x32xf32>
      %c0_47 = arith.constant 0 : index
      %c0_48 = arith.constant 0 : index
      %81 = vector.load %arg6[%c0_47, %c0_48] : memref<1x32xf32, #tpu.memory_space<vmem>>, vector<1x32xf32>
      %82 = vector.broadcast %81 : vector<1x32xf32> to vector<2x32xf32>
      %83 = arith.addf %80, %82 : vector<2x32xf32>
      %cst_49 = arith.constant dense<0.000000e+00> : vector<32xf32>
      %84 = vector.multi_reduction <add>, %83, %cst_49 [0] : vector<2x32xf32> to vector<32xf32>
      %85 = vector.shape_cast %84 : vector<32xf32> to vector<1x32xf32>
      %cst_50 = arith.constant 2.000000e+00 : f32
      %86 = vector.broadcast %cst_50 : f32 to vector<1x32xf32>
      %87 = arith.divf %85, %86 : vector<1x32xf32>
      %88 = vector.broadcast %87 : vector<1x32xf32> to vector<2x32xf32>
      %89 = arith.subf %83, %88 : vector<2x32xf32>
      %90 = arith.mulf %89, %89 : vector<2x32xf32>
      %cst_51 = arith.constant dense<0.000000e+00> : vector<32xf32>
      %91 = vector.multi_reduction <add>, %90, %cst_51 [0] : vector<2x32xf32> to vector<32xf32>
      %92 = vector.shape_cast %91 : vector<32xf32> to vector<1x32xf32>
      %cst_52 = arith.constant 2.000000e+00 : f32
      %93 = vector.broadcast %cst_52 : f32 to vector<1x32xf32>
      %94 = arith.divf %92, %93 : vector<1x32xf32>
      %95 = vector.broadcast %87 : vector<1x32xf32> to vector<2x32xf32>
      %96 = arith.subf %83, %95 : vector<2x32xf32>
      %cst_53 = arith.constant 9.99999974E-6 : f32
      %97 = vector.broadcast %cst_53 : f32 to vector<1x32xf32>
      %98 = arith.addf %94, %97 : vector<1x32xf32>
      %99 = math.rsqrt %98 : vector<1x32xf32>
      %100 = vector.broadcast %99 : vector<1x32xf32> to vector<2x32xf32>
      %101 = arith.mulf %96, %100 : vector<2x32xf32>
      %c0_54 = arith.constant 0 : index
      %c0_55 = arith.constant 0 : index
      %102 = vector.load %arg7[%c0_54, %c0_55] : memref<1x32xf32, #tpu.memory_space<vmem>>, vector<1x32xf32>
      %103 = vector.broadcast %102 : vector<1x32xf32> to vector<2x32xf32>
      %104 = arith.mulf %101, %103 : vector<2x32xf32>
      %c0_56 = arith.constant 0 : index
      %c0_57 = arith.constant 0 : index
      %105 = vector.load %arg8[%c0_56, %c0_57] : memref<1x32xf32, #tpu.memory_space<vmem>>, vector<1x32xf32>
      %106 = vector.broadcast %105 : vector<1x32xf32> to vector<2x32xf32>
      %107 = arith.addf %104, %106 : vector<2x32xf32>
      %108 = arith.mulf %107, %107 : vector<2x32xf32>
      %cst_58 = arith.constant dense<0.000000e+00> : vector<2xf32>
      %109 = vector.multi_reduction <add>, %108, %cst_58 [1] : vector<2x32xf32> to vector<2xf32>
      %110 = vector.shape_cast %109 : vector<2xf32> to vector<2x1xf32>
      %cst_59 = arith.constant 1.000000e-24 : f32
      %111 = vector.broadcast %cst_59 : f32 to vector<2x1xf32>
      %112 = arith.maximumf %110, %111 : vector<2x1xf32>
      %113 = math.rsqrt %112 : vector<2x1xf32>
      %114 = vector.broadcast %113 : vector<2x1xf32> to vector<2x32xf32>
      %115 = arith.mulf %107, %114 : vector<2x32xf32>
      %c0_60 = arith.constant 0 : index
      %c0_61 = arith.constant 0 : index
      %116 = vector.load %arg9[%c0_60, %c0_61] : memref<2x32xf32, #tpu.memory_space<vmem>>, vector<2x32xf32>
      tpu.vector_store %arg9[%c0_60, %c0_61], %115 {strides = array<i32>} : memref<2x32xf32, #tpu.memory_space<vmem>>, vector<2x32xf32>,
    } else {
    }
    return
  }
  func.func @transform_0(%arg0: i32) -> (i32, i32, i32) {
    %c0_i32 = arith.constant 0 : i32
    %c0_i32_0 = arith.constant 0 : i32
    %c0_i32_1 = arith.constant 0 : i32
    %c0_i32_2 = arith.constant 0 : i32
    return %c0_i32, %c0_i32_0, %c0_i32_1 : i32, i32, i32
  }
  func.func @transform_1(%arg0: i32) -> (i32, i32, i32) {
    %c0_i32 = arith.constant 0 : i32
    %c0_i32_0 = arith.constant 0 : i32
    %c0_i32_1 = arith.constant 0 : i32
    return %c0_i32, %arg0, %c0_i32_0 : i32, i32, i32
  }
  func.func @transform_2(%arg0: i32) -> (i32, i32, i32) {
    %c0_i32 = arith.constant 0 : i32
    %c0_i32_0 = arith.constant 0 : i32
    %c0_i32_1 = arith.constant 0 : i32
    %c0_i32_2 = arith.constant 0 : i32
    return %c0_i32, %c0_i32_0, %c0_i32_1 : i32, i32, i32
  }
  func.func @transform_3(%arg0: i32) -> (i32, i32) {
    %c0_i32 = arith.constant 0 : i32
    %c0_i32_0 = arith.constant 0 : i32
    return %arg0, %c0_i32 : i32, i32
  }
  func.func @transform_4(%arg0: i32) -> (i32, i32, i32) {
    %c0_i32 = arith.constant 0 : i32
    %c0_i32_0 = arith.constant 0 : i32
    %c0_i32_1 = arith.constant 0 : i32
    return %arg0, %c0_i32, %c0_i32_0 : i32, i32, i32
  }
  func.func @transform_5(%arg0: i32) -> (i32, i32) {
    %c0_i32 = arith.constant 0 : i32
    %c0_i32_0 = arith.constant 0 : i32
    %c0_i32_1 = arith.constant 0 : i32
    return %c0_i32, %c0_i32_0 : i32, i32
  }
  func.func @transform_6(%arg0: i32) -> (i32, i32) {
    %c0_i32 = arith.constant 0 : i32
    %c0_i32_0 = arith.constant 0 : i32
    %c0_i32_1 = arith.constant 0 : i32
    return %c0_i32, %c0_i32_0 : i32, i32
  }
  func.func @transform_7(%arg0: i32) -> (i32, i32) {
    %c0_i32 = arith.constant 0 : i32
    %c0_i32_0 = arith.constant 0 : i32
    %c0_i32_1 = arith.constant 0 : i32
    return %c0_i32, %c0_i32_0 : i32, i32
  }
  func.func @transform_8(%arg0: i32) -> (i32, i32) {
    %c0_i32 = arith.constant 0 : i32
    %c0_i32_0 = arith.constant 0 : i32
    %c0_i32_1 = arith.constant 0 : i32
    return %c0_i32, %c0_i32_0 : i32, i32
  }
}

module attributes {stable_mosaic.version = 11 : i64} {
  func.func @fc2_kernel(%arg0: i32, %arg1: memref<2x32xf32, #tpu.memory_space<vmem>>, %arg2: memref<32x10xbf16, #tpu.memory_space<vmem>>, %arg3: memref<1x10xf32, #tpu.memory_space<vmem>>, %arg4: memref<2x10xf32, #tpu.memory_space<vmem>>) attributes {dimension_semantics = [#tpu.dimension_semantics<parallel>], iteration_bounds = array<i64: 1>, scalar_prefetch = 0 : i64, scratch_operands = 0 : i64, tpu.core_type = #tpu.core_type<tc>, window_params = [{pipeline_mode = #tpu.pipeline_mode<synchronous>, transform_indices = @transform_0, window_bounds = array<i64: 2, 32>}, {transform_indices = @transform_1, window_bounds = array<i64: 32, 10>}, {transform_indices = @transform_2, window_bounds = array<i64: 1, 10>}, {transform_indices = @transform_3, window_bounds = array<i64: 2, 10>}]} {
    %c0 = arith.constant 0 : index
    %c0_0 = arith.constant 0 : index
    %0 = vector.load %arg1[%c0, %c0_0] : memref<2x32xf32, #tpu.memory_space<vmem>>, vector<2x32xf32>
    %1 = arith.truncf %0 : vector<2x32xf32> to vector<2x32xbf16>
    %c0_1 = arith.constant 0 : index
    %c0_2 = arith.constant 0 : index
    %2 = vector.load %arg2[%c0_1, %c0_2] : memref<32x10xbf16, #tpu.memory_space<vmem>>, vector<32x10xbf16>
    %cst = arith.constant dense<0.000000e+00> : vector<2x10xf32>
    %3 = tpu.matmul %1, %2, %cst {dimension_numbers = #tpu.dot_dimension_numbers<[1], [0], [0], [1], [0, 0, 1, 1], [], []>} : vector<2x32xbf16>, vector<32x10xbf16>, vector<2x10xf32> -> vector<2x10xf32>
    %c0_3 = arith.constant 0 : index
    %c0_4 = arith.constant 0 : index
    %4 = vector.load %arg3[%c0_3, %c0_4] : memref<1x10xf32, #tpu.memory_space<vmem>>, vector<1x10xf32>
    %5 = vector.broadcast %4 : vector<1x10xf32> to vector<2x10xf32>
    %6 = arith.addf %3, %5 : vector<2x10xf32>
    %c0_5 = arith.constant 0 : index
    %c0_6 = arith.constant 0 : index
    %7 = vector.load %arg4[%c0_5, %c0_6] : memref<2x10xf32, #tpu.memory_space<vmem>>, vector<2x10xf32>
    tpu.vector_store %arg4[%c0_5, %c0_6], %6 {strides = array<i32>} : memref<2x10xf32, #tpu.memory_space<vmem>>, vector<2x10xf32>,
    return
  }
  func.func @transform_0(%arg0: i32) -> (i32, i32) {
    %c0_i32 = arith.constant 0 : i32
    %c0_i32_0 = arith.constant 0 : i32
    %c0_i32_1 = arith.constant 0 : i32
    return %c0_i32, %c0_i32_0 : i32, i32
  }
  func.func @transform_1(%arg0: i32) -> (i32, i32) {
    %c0_i32 = arith.constant 0 : i32
    %c0_i32_0 = arith.constant 0 : i32
    return %c0_i32, %arg0 : i32, i32
  }
  func.func @transform_2(%arg0: i32) -> (i32, i32) {
    %c0_i32 = arith.constant 0 : i32
    %c0_i32_0 = arith.constant 0 : i32
    return %c0_i32, %arg0 : i32, i32
  }
  func.func @transform_3(%arg0: i32) -> (i32, i32) {
    %c0_i32 = arith.constant 0 : i32
    %c0_i32_0 = arith.constant 0 : i32
    return %c0_i32, %arg0 : i32, i32
  }
}

</mosaic_0001>

<llo_original>
// kernel: ghost_vlad_forward.5
$region0: #{ghost_vlad_forward.5}
  #allocation0 [shape = 'u32[]', space=smem, size = 0x4, offset = 0x4, fixed_abs, tag = 'smem constant byte address 0x4 - core index']
  #allocation1 [shape = 'u32[144,128]{1,0:T(1,128)}', space=vmem, size = 0x12000, scoped, tag = 'internal scratch']
  %s0 = inlined_call_operand.vmem [shape: f32[2,32], index: 0, kind: input, shape index: {}]
  %s1 = inlined_call_operand.vmem [shape: bf16[32,10], index: 1, kind: input, shape index: {}]
  %s2 = inlined_call_operand.vmem [shape: f32[1,10], index: 2, kind: input, shape index: {}]
  %s3 = inlined_call_operand.hbm [shape: f32[2,10], index: 3, kind: output, shape index: {}]
  %s4 = sld [smem:[#allocation0]]
  $region22: #{ghost_vlad_forward.5} parent=0
    _
  %s6 = ssub.s32 1, %s4
  %s7 = scalar_select 0, %s6, %s4
  $region1: #{ghost_vlad_forward.5} parent=0
    #allocation2 [shape = 'u8[1024]{0}', space=vmem, size = 0x400, scoped, tag = 'output window, operand 0, single buffered']
    #allocation3 [shape = 's32[1]{0}', space=sflag, size = 0x4, scoped, tag = 'scoped memory for ghost_vlad_forward.5']
    %8 = vsyncpa [#allocation3], 0
    // Predicated region
    $region2: #{ghost_vlad_forward.5} parent=1 // pred_check
      _
    $region3: #{ghost_vlad_forward.5} parent=1 // pred_check_branch
      %10 = sbr.rel (0) target = $region5
    $region4: #{ghost_vlad_forward.5} parent=1 // pred_region
      _
    $region5: #{ghost_vlad_forward.5} parent=1 // pred_fallthru
      _
    // Predicated region
    $region6: #{ghost_vlad_forward.5} parent=1 // pred_check
      _
    $region7: #{ghost_vlad_forward.5} parent=1 // pred_check_branch
      %12 = sbr.rel (0) target = $region9
    $region8: #{ghost_vlad_forward.5} parent=1 // pred_region
      _
    $region9: #{ghost_vlad_forward.5} parent=1 // pred_fallthru
      _
    // Predicated region
    $region10: #{ghost_vlad_forward.5} parent=1 // pred_check
      _
    $region11: #{ghost_vlad_forward.5} parent=1 // pred_check_branch
      %14 = sbr.rel (0) target = $region13
    $region12: #{ghost_vlad_forward.5} parent=1 // pred_region
      _
    $region13: #{ghost_vlad_forward.5} parent=1 // pred_fallthru
      _
    %v16 = vld [vmem:[%s0] sm:$0x3]
    %v17 = vpack.c.bf16 %v16, %v16
    %v18 = vld [vmem:[%s1] sm:$0xf]
    %v19 = vld [vmem:[%s1 + $0x4] sm:$0xf]
    %v20 = vld [vmem:[%s1 + $0x8] sm:$0xf]
    %v21 = vld [vmem:[%s1 + $0xc] sm:$0xf]
    %v22 = vld [vmem:[%s2] sm:$0x1]
    %v24 = vlaneseq
    %v25 = vshrl.u32 %v24, 7
    %v26 = vsub.s32 0, %v25
    %v27 = vrot.slane %v22, %v26
    %v33 = vunpack.c.l.b16 %v18
    %v34 = vunpack.c.l.b16 %v19
    %v35 = vunpack.c.l.b16 %v20
    %v36 = vunpack.c.l.b16 %v21
    %v37 = vpack.c.b16 %v34, %v33
    %v38 = vpack.c.b16 %v36, %v35
    %vm41 = vcmask 261120
    %v43 = vsel %vm41, %v17, 0
    %45 = vmatprep.subr.bf16.mxu0 0
    %46 = vmatpush1.bf16.msra.mxu0 0
    %47 = vmatprep.subr.bf16.mxu0 0
    %48 = vmatpush1.bf16.msra.mxu0 0
    %49 = vmatprep.subr.bf16.mxu0 0
    %50 = vmatpush1.bf16.msra.mxu0 0
    %51 = vmatprep.subr.bf16.mxu0 0
    %52 = vmatpush1.bf16.msra.mxu0 0
    %53 = vmatprep.subr.bf16.mxu0 0
    %54 = vmatpush1.bf16.msra.mxu0 0
    %55 = vmatprep.subr.bf16.mxu0 0
    %56 = vmatpush1.bf16.msra.mxu0 0
    %57 = vmatprep.subr.bf16.mxu0 0
    %58 = vmatpush1.bf16.msra.mxu0 %v38
    %59 = vmatprep.subr.bf16.mxu0 0
    %60 = vmatpush1.bf16.msra.mxu0 %v37
    %61 = vmatprep.subr.bf16.mxu0 0
    %62 = vmatpush2.bf16.msra.mxu0 0
    %63 = vmatprep.subr.bf16.mxu0 0
    %64 = vmatpush2.bf16.msra.mxu0 0
    %65 = vmatprep.subr.bf16.mxu0 0
    %66 = vmatpush2.bf16.msra.mxu0 0
    %67 = vmatprep.subr.bf16.mxu0 0
    %68 = vmatpush2.bf16.msra.mxu0 0
    %69 = vmatprep.subr.bf16.mxu0 0
    %70 = vmatpush2.bf16.msra.mxu0 0
    %71 = vmatprep.subr.bf16.mxu0 0
    %72 = vmatpush2.bf16.msra.mxu0 0
    %73 = vmatprep.subr.bf16.mxu0 0
    %74 = vmatpush2.bf16.msra.mxu0 0
    %75 = vmatprep.subr.bf16.mxu0 0
    %76 = vmatpush2.bf16.msra.mxu0 0
    %77 = vmatprep.mubr.bf16.mxu0 0
    %78 = vmatmul.mubr.bf16.gmra.mxu0 %v43
    %v79 = vpop.f32.mrf.mxu0
    %v80 = vadd.f32 %v27, %v79
    %v81 = vpop.f32.mrf.mxu0
    %v82 = vpop.f32.mrf.mxu0
    %v83 = vpop.f32.mrf.mxu0
    %84 = vdwg.mxu0
    %vm85 = vcmask 74752
    %86 = vst.msk [vmem:[#allocation2] sm:$0x3] %vm85, %v80
    // Predicated region
    $region14: #{ghost_vlad_forward.5} parent=1 // pred_check
      _
    $region15: #{ghost_vlad_forward.5} parent=1 // pred_check_branch
      %88 = sbr.rel (0) target = $region17
    $region16: #{ghost_vlad_forward.5} parent=1 // pred_region
      %s90 = ssub.s32 32, 32
      %91 = vsyncadd [#allocation3], %s90
      %s93 = sshll.u32 [#allocation2], 4
      %s94 = int_to_ptr.vmem [resolvable:$true] %s93
      %96 = dma.vmem_to_hbm [thread:$0]  %s94, 32, %s3, [#allocation3]
    $region17: #{ghost_vlad_forward.5} parent=1 // pred_fallthru
      _
    // Predicated region
    $region18: #{ghost_vlad_forward.5} parent=1 // pred_check
      _
    $region19: #{ghost_vlad_forward.5} parent=1 // pred_check_branch
      %98 = sbr.rel (0) target = $region21
    $region20: #{ghost_vlad_forward.5} parent=1 // pred_region
      %99 = dma.done [#allocation3], 32
    $region21: #{ghost_vlad_forward.5} parent=1 // pred_fallthru
      _
    %100 = vsyncpa [#allocation3], 1

// kernel: ghost_vlad_forward.3
$region0: #{ghost_vlad_forward.3}
  #allocation0 [shape = 'u32[]', space=smem, size = 0x4, offset = 0x4, fixed_abs, tag = 'smem constant byte address 0x4 - core index']
  #allocation1 [shape = 'u32[144,128]{1,0:T(1,128)}', space=vmem, size = 0x12000, scoped, tag = 'internal scratch']
  #allocation2 [shape = 'f32[8,512]{1,0:T(8,128)}', space=vmem, size = 0x4000, scoped, tag = 'scratch operand']
  %s0 = inlined_call_operand.vmem [shape: bf16[8,256], index: 0, kind: input, shape index: {}]
  %s1 = inlined_call_operand.hbm [shape: bf16[256,512], index: 1, kind: input, shape index: {}]
  %s2 = inlined_call_operand.vmem [shape: bf16[512,128], index: 2, kind: input, shape index: {}]
  %s3 = inlined_call_operand.vmem [shape: f32[1,128], index: 3, kind: input, shape index: {}]
  %s4 = inlined_call_operand.vmem [shape: bf16[128,8], index: 4, kind: input, shape index: {}]
  %s5 = inlined_call_operand.vmem [shape: f32[1,8], index: 5, kind: input, shape index: {}]
  %s6 = inlined_call_operand.vmem [shape: bf16[8,128], index: 6, kind: output, shape index: {0}]
  %s7 = inlined_call_operand.vmem [shape: f32[8,8], index: 7, kind: output, shape index: {1}]
  %8 = xla_tuple %s6, %s7
  %s9 = sld [smem:[#allocation0]]
  $region54: #{ghost_vlad_forward.3} parent=0
    _
  %s11 = ssub.s32 1, %s9
  %s12 = scalar_select 0, %s11, %s9
  $region1: #{ghost_vlad_forward.3} parent=0
    #allocation3 [shape = 'u8[262144]{0}', space=vmem, size = 0x40000, scoped, tag = 'input window, operand 1, single buffered']
    #allocation4 [shape = 's32[1]{0}', space=sflag, size = 0x4, scoped, tag = 'scoped memory for ghost_vlad_forward.3']
    %13 = vsyncpa [#allocation4], 0
    // Predicated region
    $region2: #{ghost_vlad_forward.3} parent=1 // pred_check
      _
    $region3: #{ghost_vlad_forward.3} parent=1 // pred_check_branch
      %15 = sbr.rel (0) target = $region5
    $region4: #{ghost_vlad_forward.3} parent=1 // pred_region
      _
    $region5: #{ghost_vlad_forward.3} parent=1 // pred_fallthru
      _
    // Predicated region
    $region6: #{ghost_vlad_forward.3} parent=1 // pred_check
      _
    $region7: #{ghost_vlad_forward.3} parent=1 // pred_check_branch
      %17 = sbr.rel (0) target = $region9
    $region8: #{ghost_vlad_forward.3} parent=1 // pred_region
      %s19 = ssub.s32 8192, 8192
      %20 = vsyncadd [#allocation4], %s19
      %s21 = sshll.u32 [#allocation3], 4
      %s22 = int_to_ptr.vmem [resolvable:$true] %s21
      %27 = dma.hbm_to_vmem [thread:$0]  %s1, 8192, %s22, [#allocation4], 256, 256, 16
    $region9: #{ghost_vlad_forward.3} parent=1 // pred_fallthru
      _
    // Predicated region
    $region10: #{ghost_vlad_forward.3} parent=1 // pred_check
      _
    $region11: #{ghost_vlad_forward.3} parent=1 // pred_check_branch
      %29 = sbr.rel (0) target = $region13
    $region12: #{ghost_vlad_forward.3} parent=1 // pred_region
      _
    $region13: #{ghost_vlad_forward.3} parent=1 // pred_fallthru
      _
    // Predicated region
    $region14: #{ghost_vlad_forward.3} parent=1 // pred_check
      _
    $region15: #{ghost_vlad_forward.3} parent=1 // pred_check_branch
      %31 = sbr.rel (0) target = $region17
    $region16: #{ghost_vlad_forward.3} parent=1 // pred_region
      _
    $region17: #{ghost_vlad_forward.3} parent=1 // pred_fallthru
      _
    // Predicated region
    $region18: #{ghost_vlad_forward.3} parent=1 // pred_check
      _
    $region19: #{ghost_vlad_forward.3} parent=1 // pred_check_branch
      %33 = sbr.rel (0) target = $region21
    $region20: #{ghost_vlad_forward.3} parent=1 // pred_region
      _
    $region21: #{ghost_vlad_forward.3} parent=1 // pred_fallthru
      _
    // Predicated region
    $region22: #{ghost_vlad_forward.3} parent=1 // pred_check
      _
    $region23: #{ghost_vlad_forward.3} parent=1 // pred_check_branch
      %35 = sbr.rel (0) target = $region25
    $region24: #{ghost_vlad_forward.3} parent=1 // pred_region
      _
    $region25: #{ghost_vlad_forward.3} parent=1 // pred_fallthru
      _
    // Predicated region
    $region26: #{ghost_vlad_forward.3} parent=1 // pred_check
      _
    $region27: #{ghost_vlad_forward.3} parent=1 // pred_check_branch
      %37 = sbr.rel (0) target = $region29
    $region28: #{ghost_vlad_forward.3} parent=1 // pred_region
      %38 = dma.done [#allocation4], 8192
    $region29: #{ghost_vlad_forward.3} parent=1 // pred_fallthru
      _
    %p40 = scmp.eq.s32.totalorder 0, 0
    // Predicated region
    $region30: #{ghost_vlad_forward.3} parent=1 // pred_check
      %p41 = pneg %p40
    $region31: #{ghost_vlad_forward.3} parent=1 // pred_check_branch
      %43 = sbr.rel (%p41) target = $region33
    $region32: #{ghost_vlad_forward.3} parent=1 // pred_region
      %44 = vst [vmem:[#allocation2] sm:$0xff] 0.0
      %45 = vst [vmem:[#allocation2 + $0x8] sm:$0xff] 0.0
      %46 = vst [vmem:[#allocation2 + $0x10] sm:$0xff] 0.0
      %47 = vst [vmem:[#allocation2 + $0x18] sm:$0xff] 0.0
    $region33: #{ghost_vlad_forward.3} parent=1 // pred_fallthru
      _
    %v48 = vld [vmem:[#allocation2] sm:$0xff]
    %v49 = vld [vmem:[#allocation2 + $0x8] sm:$0xff]
    %v50 = vld [vmem:[#allocation2 + $0x10] sm:$0xff]
    %v51 = vld [vmem:[#allocation2 + $0x18] sm:$0xff]
    %v52 = vld [vmem:[%s0] sm:$0xff]
    %v53 = vld [vmem:[#allocation3] sm:$0xff]
    %v54 = vld [vmem:[#allocation3 + $0x8] sm:$0xff]
    %v55 = vld [vmem:[#allocation3 + $0x10] sm:$0xff]
    %v56 = vld [vmem:[#allocation3 + $0x18] sm:$0xff]
    %v57 = vld [vmem:[#allocation3 + $0x20] sm:$0xff]
    %v58 = vld [vmem:[#allocation3 + $0x28] sm:$0xff]
    %v59 = vld [vmem:[#allocation3 + $0x30] sm:$0xff]
    %v60 = vld [vmem:[#allocation3 + $0x38] sm:$0xff]
    %v61 = vld [vmem:[#allocation3 + $0x40] sm:$0xff]
    %v62 = vld [vmem:[#allocation3 + $0x48] sm:$0xff]
    %v63 = vld [vmem:[#allocation3 + $0x50] sm:$0xff]
    %v64 = vld [vmem:[#allocation3 + $0x58] sm:$0xff]
    %v65 = vld [vmem:[#allocation3 + $0x60] sm:$0xff]
    %v66 = vld [vmem:[#allocation3 + $0x68] sm:$0xff]
    %v67 = vld [vmem:[#allocation3 + $0x70] sm:$0xff]
    %v68 = vld [vmem:[#allocation3 + $0x78] sm:$0xff]
    %v69 = vld [vmem:[#allocation3 + $0x80] sm:$0xff]
    %v70 = vld [vmem:[#allocation3 + $0x88] sm:$0xff]
    %v71 = vld [vmem:[#allocation3 + $0x90] sm:$0xff]
    %v72 = vld [vmem:[#allocation3 + $0x98] sm:$0xff]
    %v73 = vld [vmem:[#allocation3 + $0xa0] sm:$0xff]
    %v74 = vld [vmem:[#allocation3 + $0xa8] sm:$0xff]
    %v75 = vld [vmem:[#allocation3 + $0xb0] sm:$0xff]
    %v76 = vld [vmem:[#allocation3 + $0xb8] sm:$0xff]
    %v77 = vld [vmem:[#allocation3 + $0xc0] sm:$0xff]
    %v78 = vld [vmem:[#allocation3 + $0xc8] sm:$0xff]
    %v79 = vld [vmem:[#allocation3 + $0xd0] sm:$0xff]
    %v80 = vld [vmem:[#allocation3 + $0xd8] sm:$0xff]
    %v81 = vld [vmem:[#allocation3 + $0xe0] sm:$0xff]
    %v82 = vld [vmem:[#allocation3 + $0xe8] sm:$0xff]
    %v83 = vld [vmem:[#allocation3 + $0xf0] sm:$0xff]
    %v84 = vld [vmem:[#allocation3 + $0xf8] sm:$0xff]
    %v85 = vld [vmem:[#allocation3 + $0x100] sm:$0xff]
    %v86 = vld [vmem:[#allocation3 + $0x108] sm:$0xff]
    %v87 = vld [vmem:[#allocation3 + $0x110] sm:$0xff]
    %v88 = vld [vmem:[#allocation3 + $0x118] sm:$0xff]
    %v89 = vld [vmem:[#allocation3 + $0x120] sm:$0xff]
    %v90 = vld [vmem:[#allocation3 + $0x128] sm:$0xff]
    %v91 = vld [vmem:[#allocation3 + $0x130] sm:$0xff]
    %v92 = vld [vmem:[#allocation3 + $0x138] sm:$0xff]
    %v93 = vld [vmem:[#allocation3 + $0x140] sm:$0xff]
    %v94 = vld [vmem:[#allocation3 + $0x148] sm:$0xff]
    %v95 = vld [vmem:[#allocation3 + $0x150] sm:$0xff]
    %v96 = vld [vmem:[#allocation3 + $0x158] sm:$0xff]
    %v97 = vld [vmem:[#allocation3 + $0x160] sm:$0xff]
    %v98 = vld [vmem:[#allocation3 + $0x168] sm:$0xff]
    %v99 = vld [vmem:[#allocation3 + $0x170] sm:$0xff]
    %v100 = vld [vmem:[#allocation3 + $0x178] sm:$0xff]
    %v101 = vld [vmem:[#allocation3 + $0x180] sm:$0xff]
    %v102 = vld [vmem:[#allocation3 + $0x188] sm:$0xff]
    %v103 = vld [vmem:[#allocation3 + $0x190] sm:$0xff]
    %v104 = vld [vmem:[#allocation3 + $0x198] sm:$0xff]
    %v105 = vld [vmem:[#allocation3 + $0x1a0] sm:$0xff]
    %v106 = vld [vmem:[#allocation3 + $0x1a8] sm:$0xff]
    %v107 = vld [vmem:[#allocation3 + $0x1b0] sm:$0xff]
    %v108 = vld [vmem:[#allocation3 + $0x1b8] sm:$0xff]
    %v109 = vld [vmem:[#allocation3 + $0x1c0] sm:$0xff]
    %v110 = vld [vmem:[#allocation3 + $0x1c8] sm:$0xff]
    %v111 = vld [vmem:[#allocation3 + $0x1d0] sm:$0xff]
    %v112 = vld [vmem:[#allocation3 + $0x1d8] sm:$0xff]
    %v113 = vld [vmem:[#allocation3 + $0x1e0] sm:$0xff]
    %v114 = vld [vmem:[#allocation3 + $0x1e8] sm:$0xff]
    %v115 = vld [vmem:[#allocation3 + $0x1f0] sm:$0xff]
    %v116 = vld [vmem:[#allocation3 + $0x1f8] sm:$0xff]
    %v118 = vunpack.c.l.b16 %v52
    %v119 = vunpack.c.h.b16 %v52
    %v120 = vpack.c.b16 %v118, %v118
    %v121 = vpack.c.b16 %v119, %v119
    %v188 = vunpack.c.l.b16 %v53
    %v189 = vunpack.c.h.b16 %v53
    %v190 = vunpack.c.l.b16 %v54
    %v191 = vunpack.c.h.b16 %v54
    %v192 = vunpack.c.l.b16 %v55
    %v193 = vunpack.c.h.b16 %v55
    %v194 = vunpack.c.l.b16 %v56
    %v195 = vunpack.c.h.b16 %v56
    %v196 = vunpack.c.l.b16 %v57
    %v197 = vunpack.c.h.b16 %v57
    %v198 = vunpack.c.l.b16 %v58
    %v199 = vunpack.c.h.b16 %v58
    %v200 = vunpack.c.l.b16 %v59
    %v201 = vunpack.c.h.b16 %v59
    %v202 = vunpack.c.l.b16 %v60
    %v203 = vunpack.c.h.b16 %v60
    %v204 = vunpack.c.l.b16 %v61
    %v205 = vunpack.c.h.b16 %v61
    %v206 = vunpack.c.l.b16 %v62
    %v207 = vunpack.c.h.b16 %v62
    %v208 = vunpack.c.l.b16 %v63
    %v209 = vunpack.c.h.b16 %v63
    %v210 = vunpack.c.l.b16 %v64
    %v211 = vunpack.c.h.b16 %v64
    %v212 = vunpack.c.l.b16 %v65
    %v213 = vunpack.c.h.b16 %v65
    %v214 = vunpack.c.l.b16 %v66
    %v215 = vunpack.c.h.b16 %v66
    %v216 = vunpack.c.l.b16 %v67
    %v217 = vunpack.c.h.b16 %v67
    %v218 = vunpack.c.l.b16 %v68
    %v219 = vunpack.c.h.b16 %v68
    %v220 = vunpack.c.l.b16 %v69
    %v221 = vunpack.c.h.b16 %v69
    %v222 = vunpack.c.l.b16 %v70
    %v223 = vunpack.c.h.b16 %v70
    %v224 = vunpack.c.l.b16 %v71
    %v225 = vunpack.c.h.b16 %v71
    %v226 = vunpack.c.l.b16 %v72
    %v227 = vunpack.c.h.b16 %v72
    %v228 = vunpack.c.l.b16 %v73
    %v229 = vunpack.c.h.b16 %v73
    %v230 = vunpack.c.l.b16 %v74
    %v231 = vunpack.c.h.b16 %v74
    %v232 = vunpack.c.l.b16 %v75
    %v233 = vunpack.c.h.b16 %v75
    %v234 = vunpack.c.l.b16 %v76
    %v235 = vunpack.c.h.b16 %v76
    %v236 = vunpack.c.l.b16 %v77
    %v237 = vunpack.c.h.b16 %v77
    %v238 = vunpack.c.l.b16 %v78
    %v239 = vunpack.c.h.b16 %v78
    %v240 = vunpack.c.l.b16 %v79
    %v241 = vunpack.c.h.b16 %v79
    %v242 = vunpack.c.l.b16 %v80
    %v243 = vunpack.c.h.b16 %v80
    %v244 = vunpack.c.l.b16 %v81
    %v245 = vunpack.c.h.b16 %v81
    %v246 = vunpack.c.l.b16 %v82
    %v247 = vunpack.c.h.b16 %v82
    %v248 = vunpack.c.l.b16 %v83
    %v249 = vunpack.c.h.b16 %v83
    %v250 = vunpack.c.l.b16 %v84
    %v251 = vunpack.c.h.b16 %v84
    %v252 = vunpack.c.l.b16 %v85
    %v253 = vunpack.c.h.b16 %v85
    %v254 = vunpack.c.l.b16 %v86
    %v255 = vunpack.c.h.b16 %v86
    %v256 = vunpack.c.l.b16 %v87
    %v257 = vunpack.c.h.b16 %v87
    %v258 = vunpack.c.l.b16 %v88
    %v259 = vunpack.c.h.b16 %v88
    %v260 = vunpack.c.l.b16 %v89
    %v261 = vunpack.c.h.b16 %v89
    %v262 = vunpack.c.l.b16 %v90
    %v263 = vunpack.c.h.b16 %v90
    %v264 = vunpack.c.l.b16 %v91
    %v265 = vunpack.c.h.b16 %v91
    %v266 = vunpack.c.l.b16 %v92
    %v267 = vunpack.c.h.b16 %v92
    %v268 = vunpack.c.l.b16 %v93
    %v269 = vunpack.c.h.b16 %v93
    %v270 = vunpack.c.l.b16 %v94
    %v271 = vunpack.c.h.b16 %v94
    %v272 = vunpack.c.l.b16 %v95
    %v273 = vunpack.c.h.b16 %v95
    %v274 = vunpack.c.l.b16 %v96
    %v275 = vunpack.c.h.b16 %v96
    %v276 = vunpack.c.l.b16 %v97
    %v277 = vunpack.c.h.b16 %v97
    %v278 = vunpack.c.l.b16 %v98
    %v279 = vunpack.c.h.b16 %v98
    %v280 = vunpack.c.l.b16 %v99
    %v281 = vunpack.c.h.b16 %v99
    %v282 = vunpack.c.l.b16 %v100
    %v283 = vunpack.c.h.b16 %v100
    %v284 = vunpack.c.l.b16 %v101
    %v285 = vunpack.c.h.b16 %v101
    %v286 = vunpack.c.l.b16 %v102
    %v287 = vunpack.c.h.b16 %v102
    %v288 = vunpack.c.l.b16 %v103
    %v289 = vunpack.c.h.b16 %v103
    %v290 = vunpack.c.l.b16 %v104
    %v291 = vunpack.c.h.b16 %v104
    %v292 = vunpack.c.l.b16 %v105
    %v293 = vunpack.c.h.b16 %v105
    %v294 = vunpack.c.l.b16 %v106
    %v295 = vunpack.c.h.b16 %v106
    %v296 = vunpack.c.l.b16 %v107
    %v297 = vunpack.c.h.b16 %v107
    %v298 = vunpack.c.l.b16 %v108
    %v299 = vunpack.c.h.b16 %v108
    %v300 = vunpack.c.l.b16 %v109
    %v301 = vunpack.c.h.b16 %v109
    %v302 = vunpack.c.l.b16 %v110
    %v303 = vunpack.c.h.b16 %v110
    %v304 = vunpack.c.l.b16 %v111
    %v305 = vunpack.c.h.b16 %v111
    %v306 = vunpack.c.l.b16 %v112
    %v307 = vunpack.c.h.b16 %v112
    %v308 = vunpack.c.l.b16 %v113
    %v309 = vunpack.c.h.b16 %v113
    %v310 = vunpack.c.l.b16 %v114
    %v311 = vunpack.c.h.b16 %v114
    %v312 = vunpack.c.l.b16 %v115
    %v313 = vunpack.c.h.b16 %v115
    %v314 = vunpack.c.l.b16 %v116
    %v315 = vunpack.c.h.b16 %v116
    %v316 = vpack.c.b16 %v192, %v188
    %v317 = vpack.c.b16 %v193, %v189
    %v318 = vpack.c.b16 %v194, %v190
    %v319 = vpack.c.b16 %v195, %v191
    %v320 = vpack.c.b16 %v200, %v196
    %v321 = vpack.c.b16 %v201, %v197
    %v322 = vpack.c.b16 %v202, %v198
    %v323 = vpack.c.b16 %v203, %v199
    %v324 = vpack.c.b16 %v208, %v204
    %v325 = vpack.c.b16 %v209, %v205
    %v326 = vpack.c.b16 %v210, %v206
    %v327 = vpack.c.b16 %v211, %v207
    %v328 = vpack.c.b16 %v216, %v212
    %v329 = vpack.c.b16 %v217, %v213
    %v330 = vpack.c.b16 %v218, %v214
    %v331 = vpack.c.b16 %v219, %v215
    %v332 = vpack.c.b16 %v224, %v220
    %v333 = vpack.c.b16 %v225, %v221
    %v334 = vpack.c.b16 %v226, %v222
    %v335 = vpack.c.b16 %v227, %v223
    %v336 = vpack.c.b16 %v232, %v228
    %v337 = vpack.c.b16 %v233, %v229
    %v338 = vpack.c.b16 %v234, %v230
    %v339 = vpack.c.b16 %v235, %v231
    %v340 = vpack.c.b16 %v240, %v236
    %v341 = vpack.c.b16 %v241, %v237
    %v342 = vpack.c.b16 %v242, %v238
    %v343 = vpack.c.b16 %v243, %v239
    %v344 = vpack.c.b16 %v248, %v244
    %v345 = vpack.c.b16 %v249, %v245
    %v346 = vpack.c.b16 %v250, %v246
    %v347 = vpack.c.b16 %v251, %v247
    %v348 = vpack.c.b16 %v256, %v252
    %v349 = vpack.c.b16 %v257, %v253
    %v350 = vpack.c.b16 %v258, %v254
    %v351 = vpack.c.b16 %v259, %v255
    %v352 = vpack.c.b16 %v264, %v260
    %v353 = vpack.c.b16 %v265, %v261
    %v354 = vpack.c.b16 %v266, %v262
    %v355 = vpack.c.b16 %v267, %v263
    %v356 = vpack.c.b16 %v272, %v268
    %v357 = vpack.c.b16 %v273, %v269
    %v358 = vpack.c.b16 %v274, %v270
    %v359 = vpack.c.b16 %v275, %v271
    %v360 = vpack.c.b16 %v280, %v276
    %v361 = vpack.c.b16 %v281, %v277
    %v362 = vpack.c.b16 %v282, %v278
    %v363 = vpack.c.b16 %v283, %v279
    %v364 = vpack.c.b16 %v288, %v284
    %v365 = vpack.c.b16 %v289, %v285
    %v366 = vpack.c.b16 %v290, %v286
    %v367 = vpack.c.b16 %v291, %v287
    %v368 = vpack.c.b16 %v296, %v292
    %v369 = vpack.c.b16 %v297, %v293
    %v370 = vpack.c.b16 %v298, %v294
    %v371 = vpack.c.b16 %v299, %v295
    %v372 = vpack.c.b16 %v304, %v300
    %v373 = vpack.c.b16 %v305, %v301
    %v374 = vpack.c.b16 %v306, %v302
    %v375 = vpack.c.b16 %v307, %v303
    %v376 = vpack.c.b16 %v312, %v308
    %v377 = vpack.c.b16 %v313, %v309
    %v378 = vpack.c.b16 %v314, %v310
    %v379 = vpack.c.b16 %v315, %v311
    %444 = vmatprep.subr.bf16.mxu0 %v345
    %445 = vmatpush1.bf16.msra.mxu0 %v344
    %446 = vmatprep.subr.bf16.mxu0 %v341
    %447 = vmatpush1.bf16.msra.mxu0 %v340
    %448 = vmatprep.subr.bf16.mxu0 %v337
    %449 = vmatpush1.bf16.msra.mxu0 %v336
    %450 = vmatprep.subr.bf16.mxu0 %v333
    %451 = vmatpush1.bf16.msra.mxu0 %v332
    %452 = vmatprep.subr.bf16.mxu0 %v329
    %453 = vmatpush1.bf16.msra.mxu0 %v328
    %454 = vmatprep.subr.bf16.mxu0 %v325
    %455 = vmatpush1.bf16.msra.mxu0 %v324
    %456 = vmatprep.subr.bf16.mxu0 %v321
    %457 = vmatpush1.bf16.msra.mxu0 %v320
    %458 = vmatprep.subr.bf16.mxu0 %v317
    %459 = vmatpush1.bf16.msra.mxu0 %v316
    %460 = vmatprep.subr.bf16.mxu0 %v377
    %461 = vmatpush2.bf16.msra.mxu0 %v376
    %462 = vmatprep.subr.bf16.mxu0 %v373
    %463 = vmatpush2.bf16.msra.mxu0 %v372
    %464 = vmatprep.subr.bf16.mxu0 %v369
    %465 = vmatpush2.bf16.msra.mxu0 %v368
    %466 = vmatprep.subr.bf16.mxu0 %v365
    %467 = vmatpush2.bf16.msra.mxu0 %v364
    %468 = vmatprep.subr.bf16.mxu0 %v361
    %469 = vmatpush2.bf16.msra.mxu0 %v360
    %470 = vmatprep.subr.bf16.mxu0 %v357
    %471 = vmatpush2.bf16.msra.mxu0 %v356
    %472 = vmatprep.subr.bf16.mxu0 %v353
    %473 = vmatpush2.bf16.msra.mxu0 %v352
    %474 = vmatprep.subr.bf16.mxu0 %v349
    %475 = vmatpush2.bf16.msra.mxu0 %v348
    %476 = vmatprep.mubr.bf16.mxu0 %v121
    %477 = vmatmul.mubr.bf16.gmra.mxu0 %v120
    %v478 = vpop.f32.mrf.mxu0
    %v479 = vadd.f32 0.0, %v478
    %v480 = vpop.f32.mrf.mxu0
    %v481 = vadd.f32 0.0, %v480
    %v482 = vpop.f32.mrf.mxu0
    %v483 = vpop.f32.mrf.mxu0
    %484 = vdwg.mxu0
    %485 = vmatprep.subr.bf16.mxu0 %v347
    %486 = vmatpush1.bf16.msra.mxu0 %v346
    %487 = vmatprep.subr.bf16.mxu0 %v343
    %488 = vmatpush1.bf16.msra.mxu0 %v342
    %489 = vmatprep.subr.bf16.mxu0 %v339
    %490 = vmatpush1.bf16.msra.mxu0 %v338
    %491 = vmatprep.subr.bf16.mxu0 %v335
    %492 = vmatpush1.bf16.msra.mxu0 %v334
    %493 = vmatprep.subr.bf16.mxu0 %v331
    %494 = vmatpush1.bf16.msra.mxu0 %v330
    %495 = vmatprep.subr.bf16.mxu0 %v327
    %496 = vmatpush1.bf16.msra.mxu0 %v326
    %497 = vmatprep.subr.bf16.mxu0 %v323
    %498 = vmatpush1.bf16.msra.mxu0 %v322
    %499 = vmatprep.subr.bf16.mxu0 %v319
    %500 = vmatpush1.bf16.msra.mxu0 %v318
    %501 = vmatprep.subr.bf16.mxu0 %v379
    %502 = vmatpush2.bf16.msra.mxu0 %v378
    %503 = vmatprep.subr.bf16.mxu0 %v375
    %504 = vmatpush2.bf16.msra.mxu0 %v374
    %505 = vmatprep.subr.bf16.mxu0 %v371
    %506 = vmatpush2.bf16.msra.mxu0 %v370
    %507 = vmatprep.subr.bf16.mxu0 %v367
    %508 = vmatpush2.bf16.msra.mxu0 %v366
    %509 = vmatprep.subr.bf16.mxu0 %v363
    %510 = vmatpush2.bf16.msra.mxu0 %v362
    %511 = vmatprep.subr.bf16.mxu0 %v359
    %512 = vmatpush2.bf16.msra.mxu0 %v358
    %513 = vmatprep.subr.bf16.mxu0 %v355
    %514 = vmatpush2.bf16.msra.mxu0 %v354
    %515 = vmatprep.subr.bf16.mxu0 %v351
    %516 = vmatpush2.bf16.msra.mxu0 %v350
    %517 = vmatprep.mubr.bf16.mxu0 %v121
    %518 = vmatmul.mubr.bf16.gmra.mxu0 %v120
    %v519 = vpop.f32.mrf.mxu0
    %v520 = vadd.f32 0.0, %v519
    %v521 = vpop.f32.mrf.mxu0
    %v522 = vadd.f32 0.0, %v521
    %v523 = vpop.f32.mrf.mxu0
    %v524 = vpop.f32.mrf.mxu0
    %525 = vdwg.mxu0
    %v526 = vadd.f32 %v48, %v479
    %v527 = vadd.f32 %v49, %v481
    %v528 = vadd.f32 %v50, %v520
    %v529 = vadd.f32 %v51, %v522
    %530 = vst [vmem:[#allocation2] sm:$0xff] %v526
    %531 = vst [vmem:[#allocation2 + $0x8] sm:$0xff] %v527
    %532 = vst [vmem:[#allocation2 + $0x10] sm:$0xff] %v528
    %533 = vst [vmem:[#allocation2 + $0x18] sm:$0xff] %v529
    // Predicated region
    $region34: #{ghost_vlad_forward.3} parent=1 // pred_check
      %p534 = pneg %p40
    $region35: #{ghost_vlad_forward.3} parent=1 // pred_check_branch
      %536 = sbr.rel (%p534) target = $region37
    $region36: #{ghost_vlad_forward.3} parent=1 // pred_region
      %v537 = vld [vmem:[#allocation2] sm:$0xff]
      %v538 = vld [vmem:[#allocation2 + $0x8] sm:$0xff]
      %v539 = vld [vmem:[#allocation2 + $0x10] sm:$0xff]
      %v540 = vld [vmem:[#allocation2 + $0x18] sm:$0xff]
      %v541 = vpack.c.bf16 %v537, %v537
      %v542 = vpack.c.bf16 %v538, %v538
      %v543 = vpack.c.bf16 %v539, %v539
      %v544 = vpack.c.bf16 %v540, %v540
      %v545 = vld [vmem:[%s2] sm:$0xf]
      %v546 = vld [vmem:[%s2 + $0x4] sm:$0xf]
      %v547 = vld [vmem:[%s2 + $0x8] sm:$0xf]
      %v548 = vld [vmem:[%s2 + $0xc] sm:$0xf]
      %v549 = vld [vmem:[%s2 + $0x10] sm:$0xf]
      %v550 = vld [vmem:[%s2 + $0x14] sm:$0xf]
      %v551 = vld [vmem:[%s2 + $0x18] sm:$0xf]
      %v552 = vld [vmem:[%s2 + $0x1c] sm:$0xf]
      %v553 = vld [vmem:[%s2 + $0x20] sm:$0xf]
      %v554 = vld [vmem:[%s2 + $0x24] sm:$0xf]
      %v555 = vld [vmem:[%s2 + $0x28] sm:$0xf]
      %v556 = vld [vmem:[%s2 + $0x2c] sm:$0xf]
      %v557 = vld [vmem:[%s2 + $0x30] sm:$0xf]
      %v558 = vld [vmem:[%s2 + $0x34] sm:$0xf]
      %v559 = vld [vmem:[%s2 + $0x38] sm:$0xf]
      %v560 = vld [vmem:[%s2 + $0x3c] sm:$0xf]
      %v561 = vld [vmem:[%s2 + $0x40] sm:$0xf]
      %v562 = vld [vmem:[%s2 + $0x44] sm:$0xf]
      %v563 = vld [vmem:[%s2 + $0x48] sm:$0xf]
      %v564 = vld [vmem:[%s2 + $0x4c] sm:$0xf]
      %v565 = vld [vmem:[%s2 + $0x50] sm:$0xf]
      %v566 = vld [vmem:[%s2 + $0x54] sm:$0xf]
      %v567 = vld [vmem:[%s2 + $0x58] sm:$0xf]
      %v568 = vld [vmem:[%s2 + $0x5c] sm:$0xf]
      %v569 = vld [vmem:[%s2 + $0x60] sm:$0xf]
      %v570 = vld [vmem:[%s2 + $0x64] sm:$0xf]
      %v571 = vld [vmem:[%s2 + $0x68] sm:$0xf]
      %v572 = vld [vmem:[%s2 + $0x6c] sm:$0xf]
      %v573 = vld [vmem:[%s2 + $0x70] sm:$0xf]
      %v574 = vld [vmem:[%s2 + $0x74] sm:$0xf]
      %v575 = vld [vmem:[%s2 + $0x78] sm:$0xf]
      %v576 = vld [vmem:[%s2 + $0x7c] sm:$0xf]
      %v577 = vld [vmem:[%s2 + $0x80] sm:$0xf]
      %v578 = vld [vmem:[%s2 + $0x84] sm:$0xf]
      %v579 = vld [vmem:[%s2 + $0x88] sm:$0xf]
      %v580 = vld [vmem:[%s2 + $0x8c] sm:$0xf]
      %v581 = vld [vmem:[%s2 + $0x90] sm:$0xf]
      %v582 = vld [vmem:[%s2 + $0x94] sm:$0xf]
      %v583 = vld [vmem:[%s2 + $0x98] sm:$0xf]
      %v584 = vld [vmem:[%s2 + $0x9c] sm:$0xf]
      %v585 = vld [vmem:[%s2 + $0xa0] sm:$0xf]
      %v586 = vld [vmem:[%s2 + $0xa4] sm:$0xf]
      %v587 = vld [vmem:[%s2 + $0xa8] sm:$0xf]
      %v588 = vld [vmem:[%s2 + $0xac] sm:$0xf]
      %v589 = vld [vmem:[%s2 + $0xb0] sm:$0xf]
      %v590 = vld [vmem:[%s2 + $0xb4] sm:$0xf]
      %v591 = vld [vmem:[%s2 + $0xb8] sm:$0xf]
      %v592 = vld [vmem:[%s2 + $0xbc] sm:$0xf]
      %v593 = vld [vmem:[%s2 + $0xc0] sm:$0xf]
      %v594 = vld [vmem:[%s2 + $0xc4] sm:$0xf]
      %v595 = vld [vmem:[%s2 + $0xc8] sm:$0xf]
      %v596 = vld [vmem:[%s2 + $0xcc] sm:$0xf]
      %v597 = vld [vmem:[%s2 + $0xd0] sm:$0xf]
      %v598 = vld [vmem:[%s2 + $0xd4] sm:$0xf]
      %v599 = vld [vmem:[%s2 + $0xd8] sm:$0xf]
      %v600 = vld [vmem:[%s2 + $0xdc] sm:$0xf]
      %v601 = vld [vmem:[%s2 + $0xe0] sm:$0xf]
      %v602 = vld [vmem:[%s2 + $0xe4] sm:$0xf]
      %v603 = vld [vmem:[%s2 + $0xe8] sm:$0xf]
      %v604 = vld [vmem:[%s2 + $0xec] sm:$0xf]
      %v605 = vld [vmem:[%s2 + $0xf0] sm:$0xf]
      %v606 = vld [vmem:[%s2 + $0xf4] sm:$0xf]
      %v607 = vld [vmem:[%s2 + $0xf8] sm:$0xf]
      %v608 = vld [vmem:[%s2 + $0xfc] sm:$0xf]
      %v609 = vld [vmem:[%s3] sm:$0x1]
      %v611 = vlaneseq
      %v612 = vshrl.u32 %v611, 7
      %v613 = vsub.s32 0, %v612
      %v614 = vrot.slane %v609, %v613
      %v680 = vunpack.c.l.b16 %v545
      %v681 = vunpack.c.l.b16 %v546
      %v682 = vunpack.c.l.b16 %v547
      %v683 = vunpack.c.l.b16 %v548
      %v684 = vunpack.c.l.b16 %v549
      %v685 = vunpack.c.l.b16 %v550
      %v686 = vunpack.c.l.b16 %v551
      %v687 = vunpack.c.l.b16 %v552
      %v688 = vunpack.c.l.b16 %v553
      %v689 = vunpack.c.l.b16 %v554
      %v690 = vunpack.c.l.b16 %v555
      %v691 = vunpack.c.l.b16 %v556
      %v692 = vunpack.c.l.b16 %v557
      %v693 = vunpack.c.l.b16 %v558
      %v694 = vunpack.c.l.b16 %v559
      %v695 = vunpack.c.l.b16 %v560
      %v696 = vunpack.c.l.b16 %v561
      %v697 = vunpack.c.l.b16 %v562
      %v698 = vunpack.c.l.b16 %v563
      %v699 = vunpack.c.l.b16 %v564
      %v700 = vunpack.c.l.b16 %v565
      %v701 = vunpack.c.l.b16 %v566
      %v702 = vunpack.c.l.b16 %v567
      %v703 = vunpack.c.l.b16 %v568
      %v704 = vunpack.c.l.b16 %v569
      %v705 = vunpack.c.l.b16 %v570
      %v706 = vunpack.c.l.b16 %v571
      %v707 = vunpack.c.l.b16 %v572
      %v708 = vunpack.c.l.b16 %v573
      %v709 = vunpack.c.l.b16 %v574
      %v710 = vunpack.c.l.b16 %v575
      %v711 = vunpack.c.l.b16 %v576
      %v712 = vunpack.c.l.b16 %v577
      %v713 = vunpack.c.l.b16 %v578
      %v714 = vunpack.c.l.b16 %v579
      %v715 = vunpack.c.l.b16 %v580
      %v716 = vunpack.c.l.b16 %v581
      %v717 = vunpack.c.l.b16 %v582
      %v718 = vunpack.c.l.b16 %v583
      %v719 = vunpack.c.l.b16 %v584
      %v720 = vunpack.c.l.b16 %v585
      %v721 = vunpack.c.l.b16 %v586
      %v722 = vunpack.c.l.b16 %v587
      %v723 = vunpack.c.l.b16 %v588
      %v724 = vunpack.c.l.b16 %v589
      %v725 = vunpack.c.l.b16 %v590
      %v726 = vunpack.c.l.b16 %v591
      %v727 = vunpack.c.l.b16 %v592
      %v728 = vunpack.c.l.b16 %v593
      %v729 = vunpack.c.l.b16 %v594
      %v730 = vunpack.c.l.b16 %v595
      %v731 = vunpack.c.l.b16 %v596
      %v732 = vunpack.c.l.b16 %v597
      %v733 = vunpack.c.l.b16 %v598
      %v734 = vunpack.c.l.b16 %v599
      %v735 = vunpack.c.l.b16 %v600
      %v736 = vunpack.c.l.b16 %v601
      %v737 = vunpack.c.l.b16 %v602
      %v738 = vunpack.c.l.b16 %v603
      %v739 = vunpack.c.l.b16 %v604
      %v740 = vunpack.c.l.b16 %v605
      %v741 = vunpack.c.l.b16 %v606
      %v742 = vunpack.c.l.b16 %v607
      %v743 = vunpack.c.l.b16 %v608
      %v744 = vpack.c.b16 %v681, %v680
      %v745 = vpack.c.b16 %v683, %v682
      %v746 = vpack.c.b16 %v685, %v684
      %v747 = vpack.c.b16 %v687, %v686
      %v748 = vpack.c.b16 %v689, %v688
      %v749 = vpack.c.b16 %v691, %v690
      %v750 = vpack.c.b16 %v693, %v692
      %v751 = vpack.c.b16 %v695, %v694
      %v752 = vpack.c.b16 %v697, %v696
      %v753 = vpack.c.b16 %v699, %v698
      %v754 = vpack.c.b16 %v701, %v700
      %v755 = vpack.c.b16 %v703, %v702
      %v756 = vpack.c.b16 %v705, %v704
      %v757 = vpack.c.b16 %v707, %v706
      %v758 = vpack.c.b16 %v709, %v708
      %v759 = vpack.c.b16 %v711, %v710
      %v760 = vpack.c.b16 %v713, %v712
      %v761 = vpack.c.b16 %v715, %v714
      %v762 = vpack.c.b16 %v717, %v716
      %v763 = vpack.c.b16 %v719, %v718
      %v764 = vpack.c.b16 %v721, %v720
      %v765 = vpack.c.b16 %v723, %v722
      %v766 = vpack.c.b16 %v725, %v724
      %v767 = vpack.c.b16 %v727, %v726
      %v768 = vpack.c.b16 %v729, %v728
      %v769 = vpack.c.b16 %v731, %v730
      %v770 = vpack.c.b16 %v733, %v732
      %v771 = vpack.c.b16 %v735, %v734
      %v772 = vpack.c.b16 %v737, %v736
      %v773 = vpack.c.b16 %v739, %v738
      %v774 = vpack.c.b16 %v741, %v740
      %v775 = vpack.c.b16 %v743, %v742
      %808 = vmatprep.subr.bf16.mxu0 0
      %809 = vmatpush1.bf16.msra.mxu0 %v751
      %810 = vmatprep.subr.bf16.mxu0 0
      %811 = vmatpush1.bf16.msra.mxu0 %v750
      %812 = vmatprep.subr.bf16.mxu0 0
      %813 = vmatpush1.bf16.msra.mxu0 %v749
      %814 = vmatprep.subr.bf16.mxu0 0
      %815 = vmatpush1.bf16.msra.mxu0 %v748
      %816 = vmatprep.subr.bf16.mxu0 0
      %817 = vmatpush1.bf16.msra.mxu0 %v747
      %818 = vmatprep.subr.bf16.mxu0 0
      %819 = vmatpush1.bf16.msra.mxu0 %v746
      %820 = vmatprep.subr.bf16.mxu0 0
      %821 = vmatpush1.bf16.msra.mxu0 %v745
      %822 = vmatprep.subr.bf16.mxu0 0
      %823 = vmatpush1.bf16.msra.mxu0 %v744
      %824 = vmatprep.subr.bf16.mxu0 0
      %825 = vmatpush2.bf16.msra.mxu0 %v759
      %826 = vmatprep.subr.bf16.mxu0 0
      %827 = vmatpush2.bf16.msra.mxu0 %v758
      %828 = vmatprep.subr.bf16.mxu0 0
      %829 = vmatpush2.bf16.msra.mxu0 %v757
      %830 = vmatprep.subr.bf16.mxu0 0
      %831 = vmatpush2.bf16.msra.mxu0 %v756
      %832 = vmatprep.subr.bf16.mxu0 0
      %833 = vmatpush2.bf16.msra.mxu0 %v755
      %834 = vmatprep.subr.bf16.mxu0 0
      %835 = vmatpush2.bf16.msra.mxu0 %v754
      %836 = vmatprep.subr.bf16.mxu0 0
      %837 = vmatpush2.bf16.msra.mxu0 %v753
      %838 = vmatprep.subr.bf16.mxu0 0
      %839 = vmatpush2.bf16.msra.mxu0 %v752
      %840 = vmatprep.mubr.bf16.mxu0 %v542
      %841 = vmatmul.mubr.bf16.gmra.mxu0 %v541
      %v842 = vpop.f32.mrf.mxu0
      %v843 = vadd.f32 %v614, %v842
      %v844 = vpop.f32.mrf.mxu0
      %v845 = vpop.f32.mrf.mxu0
      %v846 = vpop.f32.mrf.mxu0
      %847 = vdwg.mxu0
      %848 = vmatprep.subr.bf16.mxu0 0
      %849 = vmatpush1.bf16.msra.mxu0 %v767
      %850 = vmatprep.subr.bf16.mxu0 0
      %851 = vmatpush1.bf16.msra.mxu0 %v766
      %852 = vmatprep.subr.bf16.mxu0 0
      %853 = vmatpush1.bf16.msra.mxu0 %v765
      %854 = vmatprep.subr.bf16.mxu0 0
      %855 = vmatpush1.bf16.msra.mxu0 %v764
      %856 = vmatprep.subr.bf16.mxu0 0
      %857 = vmatpush1.bf16.msra.mxu0 %v763
      %858 = vmatprep.subr.bf16.mxu0 0
      %859 = vmatpush1.bf16.msra.mxu0 %v762
      %860 = vmatprep.subr.bf16.mxu0 0
      %861 = vmatpush1.bf16.msra.mxu0 %v761
      %862 = vmatprep.subr.bf16.mxu0 0
      %863 = vmatpush1.bf16.msra.mxu0 %v760
      %864 = vmatprep.subr.bf16.mxu0 0
      %865 = vmatpush2.bf16.msra.mxu0 %v775
      %866 = vmatprep.subr.bf16.mxu0 0
      %867 = vmatpush2.bf16.msra.mxu0 %v774
      %868 = vmatprep.subr.bf16.mxu0 0
      %869 = vmatpush2.bf16.msra.mxu0 %v773
      %870 = vmatprep.subr.bf16.mxu0 0
      %871 = vmatpush2.bf16.msra.mxu0 %v772
      %872 = vmatprep.subr.bf16.mxu0 0
      %873 = vmatpush2.bf16.msra.mxu0 %v771
      %874 = vmatprep.subr.bf16.mxu0 0
      %875 = vmatpush2.bf16.msra.mxu0 %v770
      %876 = vmatprep.subr.bf16.mxu0 0
      %877 = vmatpush2.bf16.msra.mxu0 %v769
      %878 = vmatprep.subr.bf16.mxu0 0
      %879 = vmatpush2.bf16.msra.mxu0 %v768
      %880 = vmatprep.mubr.bf16.mxu0 %v544
      %881 = vmatmul.mubr.bf16.gmra.mxu0 %v543
      %v882 = vpop.f32.mrf.mxu0
      %v883 = vadd.f32 %v843, %v882
      %v884 = vpop.f32.mrf.mxu0
      %v885 = vpop.f32.mrf.mxu0
      %v886 = vpop.f32.mrf.mxu0
      %887 = vdwg.mxu0
      %v888 = vmul.f32 %v883, %v883
      %889 = vadd.xlane.f32.xlu0 %v888
      %v890 = vpop.xlane.xlu0 %889
      %v891 = vmax.f32 %v890, 1e-24
      %v892 = vrsqrt.pop %v891
      %v893 = vmul.f32 %v883, %v892
      %v894 = vpack.c.bf16 %v893, %v893
      %895 = vst [vmem:[%s6] sm:$0xf] %v894
      %v896 = vld [vmem:[%s4] sm:$0xf]
      %v897 = vld [vmem:[%s4 + $0x4] sm:$0xf]
      %v898 = vld [vmem:[%s4 + $0x8] sm:$0xf]
      %v899 = vld [vmem:[%s4 + $0xc] sm:$0xf]
      %v900 = vld [vmem:[%s4 + $0x10] sm:$0xf]
      %v901 = vld [vmem:[%s4 + $0x14] sm:$0xf]
      %v902 = vld [vmem:[%s4 + $0x18] sm:$0xf]
      %v903 = vld [vmem:[%s4 + $0x1c] sm:$0xf]
      %v904 = vld [vmem:[%s4 + $0x20] sm:$0xf]
      %v905 = vld [vmem:[%s4 + $0x24] sm:$0xf]
      %v906 = vld [vmem:[%s4 + $0x28] sm:$0xf]
      %v907 = vld [vmem:[%s4 + $0x2c] sm:$0xf]
      %v908 = vld [vmem:[%s4 + $0x30] sm:$0xf]
      %v909 = vld [vmem:[%s4 + $0x34] sm:$0xf]
      %v910 = vld [vmem:[%s4 + $0x38] sm:$0xf]
      %v911 = vld [vmem:[%s4 + $0x3c] sm:$0xf]
      %v912 = vld [vmem:[%s5] sm:$0x1]
      %v914 = vlaneseq
      %v915 = vshrl.u32 %v914, 7
      %v916 = vsub.s32 0, %v915
      %v917 = vrot.slane %v912, %v916
      %v935 = vunpack.c.l.b16 %v896
      %v936 = vunpack.c.l.b16 %v897
      %v937 = vunpack.c.l.b16 %v898
      %v938 = vunpack.c.l.b16 %v899
      %v939 = vunpack.c.l.b16 %v900
      %v940 = vunpack.c.l.b16 %v901
      %v941 = vunpack.c.l.b16 %v902
      %v942 = vunpack.c.l.b16 %v903
      %v943 = vunpack.c.l.b16 %v904
      %v944 = vunpack.c.l.b16 %v905
      %v945 = vunpack.c.l.b16 %v906
      %v946 = vunpack.c.l.b16 %v907
      %v947 = vunpack.c.l.b16 %v908
      %v948 = vunpack.c.l.b16 %v909
      %v949 = vunpack.c.l.b16 %v910
      %v950 = vunpack.c.l.b16 %v911
      %v951 = vpack.c.b16 %v936, %v935
      %v952 = vpack.c.b16 %v938, %v937
      %v953 = vpack.c.b16 %v940, %v939
      %v954 = vpack.c.b16 %v942, %v941
      %v955 = vpack.c.b16 %v944, %v943
      %v956 = vpack.c.b16 %v946, %v945
      %v957 = vpack.c.b16 %v948, %v947
      %v958 = vpack.c.b16 %v950, %v949
      %967 = vmatprep.subr.bf16.mxu0 0
      %968 = vmatpush1.bf16.msra.mxu0 %v958
      %969 = vmatprep.subr.bf16.mxu0 0
      %970 = vmatpush1.bf16.msra.mxu0 %v957
      %971 = vmatprep.subr.bf16.mxu0 0
      %972 = vmatpush1.bf16.msra.mxu0 %v956
      %973 = vmatprep.subr.bf16.mxu0 0
      %974 = vmatpush1.bf16.msra.mxu0 %v955
      %975 = vmatprep.subr.bf16.mxu0 0
      %976 = vmatpush1.bf16.msra.mxu0 %v954
      %977 = vmatprep.subr.bf16.mxu0 0
      %978 = vmatpush1.bf16.msra.mxu0 %v953
      %979 = vmatprep.subr.bf16.mxu0 0
      %980 = vmatpush1.bf16.msra.mxu0 %v952
      %981 = vmatprep.subr.bf16.mxu0 0
      %982 = vmatpush1.bf16.msra.mxu0 %v951
      %983 = vmatprep.subr.bf16.mxu0 0
      %984 = vmatpush2.bf16.msra.mxu0 0
      %985 = vmatprep.subr.bf16.mxu0 0
      %986 = vmatpush2.bf16.msra.mxu0 0
      %987 = vmatprep.subr.bf16.mxu0 0
      %988 = vmatpush2.bf16.msra.mxu0 0
      %989 = vmatprep.subr.bf16.mxu0 0
      %990 = vmatpush2.bf16.msra.mxu0 0
      %991 = vmatprep.subr.bf16.mxu0 0
      %992 = vmatpush2.bf16.msra.mxu0 0
      %993 = vmatprep.subr.bf16.mxu0 0
      %994 = vmatpush2.bf16.msra.mxu0 0
      %995 = vmatprep.subr.bf16.mxu0 0
      %996 = vmatpush2.bf16.msra.mxu0 0
      %997 = vmatprep.subr.bf16.mxu0 0
      %998 = vmatpush2.bf16.msra.mxu0 0
      %999 = vmatprep.mubr.bf16.mxu0 0
      %1000 = vmatmul.mubr.bf16.gmra.mxu0 %v894
      %v1001 = vpop.f32.mrf.mxu0
      %v1002 = vadd.f32 %v917, %v1001
      %v1003 = vpop.f32.mrf.mxu0
      %v1004 = vpop.f32.mrf.mxu0
      %v1005 = vpop.f32.mrf.mxu0
      %1006 = vdwg.mxu0
      %vm1007 = vcmask 64512
      %1008 = vst.msk [vmem:[%s7] sm:$0xff] %vm1007, %v1002
    $region37: #{ghost_vlad_forward.3} parent=1 // pred_fallthru
      _
    // Predicated region
    $region38: #{ghost_vlad_forward.3} parent=1 // pred_check
      _
    $region39: #{ghost_vlad_forward.3} parent=1 // pred_check_branch
      %1010 = sbr.rel (0) target = $region41
    $region40: #{ghost_vlad_forward.3} parent=1 // pred_region
      _
    $region41: #{ghost_vlad_forward.3} parent=1 // pred_fallthru
      _
    // Predicated region
    $region42: #{ghost_vlad_forward.3} parent=1 // pred_check
      _
    $region43: #{ghost_vlad_forward.3} parent=1 // pred_check_branch
      %1012 = sbr.rel (0) target = $region45
    $region44: #{ghost_vlad_forward.3} parent=1 // pred_region
      _
    $region45: #{ghost_vlad_forward.3} parent=1 // pred_fallthru
      _
    // Predicated region
    $region46: #{ghost_vlad_forward.3} parent=1 // pred_check
      _
    $region47: #{ghost_vlad_forward.3} parent=1 // pred_check_branch
      %1014 = sbr.rel (0) target = $region49
    $region48: #{ghost_vlad_forward.3} parent=1 // pred_region
      _
    $region49: #{ghost_vlad_forward.3} parent=1 // pred_fallthru
      _
    // Predicated region
    $region50: #{ghost_vlad_forward.3} parent=1 // pred_check
      _
    $region51: #{ghost_vlad_forward.3} parent=1 // pred_check_branch
      %1016 = sbr.rel (0) target = $region53
    $region52: #{ghost_vlad_forward.3} parent=1 // pred_region
      _
    $region53: #{ghost_vlad_forward.3} parent=1 // pred_fallthru
      _
    %1017 = vsyncpa [#allocation4], 1

// kernel: ghost_vlad_forward.4
$region0: #{ghost_vlad_forward.4}
  #allocation0 [shape = 'u32[]', space=smem, size = 0x4, offset = 0x4, fixed_abs, tag = 'smem constant byte address 0x4 - core index']
  #allocation1 [shape = 'u32[144,128]{1,0:T(1,128)}', space=vmem, size = 0x12000, scoped, tag = 'internal scratch']
  #allocation2 [shape = 'f32[2,32]{1,0:T(2,128)}', space=vmem, size = 0x400, scoped, tag = 'scratch operand']
  %s0 = inlined_call_operand.vmem [shape: bf16[2,4,128], index: 0, kind: input, shape index: {}]
  %s1 = inlined_call_operand.vmem [shape: f32[2,8,4], index: 1, kind: input, shape index: {}]
  %s2 = inlined_call_operand.vmem [shape: f32[2,1,4], index: 2, kind: input, shape index: {}]
  %s3 = inlined_call_operand.vmem [shape: f32[8,128], index: 3, kind: input, shape index: {}]
  %s4 = inlined_call_operand.vmem [shape: bf16[8,128,32], index: 4, kind: input, shape index: {}]
  %s5 = inlined_call_operand.vmem [shape: f32[1,32], index: 5, kind: input, shape index: {}]
  %s6 = inlined_call_operand.vmem [shape: f32[1,32], index: 6, kind: input, shape index: {}]
  %s7 = inlined_call_operand.vmem [shape: f32[1,32], index: 7, kind: input, shape index: {}]
  %s8 = inlined_call_operand.vmem [shape: f32[2,32], index: 8, kind: output, shape index: {}]
  %s9 = sld [smem:[#allocation0]]
  $region50: #{ghost_vlad_forward.4} parent=0
    _
  %s11 = ssub.s32 1, %s9
  %s12 = scalar_select 0, %s11, %s9
  // Predicated region
  $region2: #{ghost_vlad_forward.4} parent=0 // pred_check
    _
  $region3: #{ghost_vlad_forward.4} parent=0 // pred_check_branch
    %14 = sbr.rel (0) target = $region5
  $region4: #{ghost_vlad_forward.4} parent=0 // pred_region
    _
  $region5: #{ghost_vlad_forward.4} parent=0 // pred_fallthru
    _
  // Predicated region
  $region6: #{ghost_vlad_forward.4} parent=0 // pred_check
    _
  $region7: #{ghost_vlad_forward.4} parent=0 // pred_check_branch
    %16 = sbr.rel (0) target = $region9
  $region8: #{ghost_vlad_forward.4} parent=0 // pred_region
    _
  $region9: #{ghost_vlad_forward.4} parent=0 // pred_fallthru
    _
  // Predicated region
  $region10: #{ghost_vlad_forward.4} parent=0 // pred_check
    _
  $region11: #{ghost_vlad_forward.4} parent=0 // pred_check_branch
    %18 = sbr.rel (0) target = $region13
  $region12: #{ghost_vlad_forward.4} parent=0 // pred_region
    _
  $region13: #{ghost_vlad_forward.4} parent=0 // pred_fallthru
    _
  // Predicated region
  $region14: #{ghost_vlad_forward.4} parent=0 // pred_check
    _
  $region15: #{ghost_vlad_forward.4} parent=0 // pred_check_branch
    %20 = sbr.rel (0) target = $region17
  $region16: #{ghost_vlad_forward.4} parent=0 // pred_region
    _
  $region17: #{ghost_vlad_forward.4} parent=0 // pred_fallthru
    _
  // Predicated region
  $region18: #{ghost_vlad_forward.4} parent=0 // pred_check
    _
  $region19: #{ghost_vlad_forward.4} parent=0 // pred_check_branch
    %22 = sbr.rel (0) target = $region21
  $region20: #{ghost_vlad_forward.4} parent=0 // pred_region
    _
  $region21: #{ghost_vlad_forward.4} parent=0 // pred_fallthru
    _
  // Predicated region
  $region22: #{ghost_vlad_forward.4} parent=0 // pred_check
    _
  $region23: #{ghost_vlad_forward.4} parent=0 // pred_check_branch
    %24 = sbr.rel (0) target = $region25
  $region24: #{ghost_vlad_forward.4} parent=0 // pred_region
    _
  $region25: #{ghost_vlad_forward.4} parent=0 // pred_fallthru
    _
  // Predicated region
  $region26: #{ghost_vlad_forward.4} parent=0 // pred_check
    _
  $region27: #{ghost_vlad_forward.4} parent=0 // pred_check_branch
    %26 = sbr.rel (0) target = $region29
  $region28: #{ghost_vlad_forward.4} parent=0 // pred_region
    _
  $region29: #{ghost_vlad_forward.4} parent=0 // pred_fallthru
    _
  // Predicated region
  $region30: #{ghost_vlad_forward.4} parent=0 // pred_check
    _
  $region31: #{ghost_vlad_forward.4} parent=0 // pred_check_branch
    %28 = sbr.rel (0) target = $region33
  $region32: #{ghost_vlad_forward.4} parent=0 // pred_region
    _
  $region33: #{ghost_vlad_forward.4} parent=0 // pred_fallthru
    _
  %p30 = scmp.eq.s32.totalorder 0, 0
  // Predicated region
  $region34: #{ghost_vlad_forward.4} parent=0 // pred_check
    %p31 = pneg %p30
  $region35: #{ghost_vlad_forward.4} parent=0 // pred_check_branch
    %33 = sbr.rel (%p31) target = $region37
  $region36: #{ghost_vlad_forward.4} parent=0 // pred_region
    %vm34 = vcmask 254976
    %35 = vst.msk [vmem:[#allocation2] sm:$0x3] %vm34, 0.0
  $region37: #{ghost_vlad_forward.4} parent=0 // pred_fallthru
    _
  %v36 = vld [vmem:[%s0] sm:$0x3]
  %v37 = vld [vmem:[%s0 + $0x2] sm:$0x3]
  %v38 = vld [vmem:[%s1] sm:$0xff]
  %v39 = vld [vmem:[%s1 + $0x8] sm:$0xff]
  %v40 = vld [vmem:[%s2] sm:$0x1]
  %v41 = vld [vmem:[%s2 + $0x1] sm:$0x1]
  %v44 = vlaneseq
  %v45 = vshrl.u32 %v44, 7
  %v46 = vsub.s32 0, %v45
  %v47 = vrot.slane %v40, %v46
  %v48 = vlaneseq
  %v49 = vshrl.u32 %v48, 7
  %v50 = vsub.s32 0, %v49
  %v51 = vrot.slane %v41, %v50
  %v54 = vmul.f32 %v38, %v47
  %v55 = vmul.f32 %v39, %v51
  %vm56 = vcmask 31744
  %v57 = vsel %vm56, %v54, 0.0
  %58 = vadd.xlane.f32.xlu0 %v57
  %v59 = vpop.xlane.xlu0 %58
  %v60 = vsel %vm56, %v55, 0.0
  %61 = vadd.xlane.f32.xlu0 %v60
  %v62 = vpop.xlane.xlu0 %61
  %v63 = vpack.c.bf16 %v54, %v54
  %v64 = vpack.c.bf16 %v55, %v55
  %v66 = vsel %vm56, %v63, 0
  %vm68 = vcmask 1041408
  %v70 = vsel %vm68, %v36, 0
  %72 = vmatprep.subr.bf16.mxu0 0
  %73 = vmatpush1.bf16.msra.mxu0 0
  %74 = vmatprep.subr.bf16.mxu0 0
  %75 = vmatpush1.bf16.msra.mxu0 0
  %76 = vmatprep.subr.bf16.mxu0 0
  %77 = vmatpush1.bf16.msra.mxu0 0
  %78 = vmatprep.subr.bf16.mxu0 0
  %79 = vmatpush1.bf16.msra.mxu0 0
  %80 = vmatprep.subr.bf16.mxu0 0
  %81 = vmatpush1.bf16.msra.mxu0 0
  %82 = vmatprep.subr.bf16.mxu0 0
  %83 = vmatpush1.bf16.msra.mxu0 0
  %84 = vmatprep.subr.bf16.mxu0 0
  %85 = vmatpush1.bf16.msra.mxu0 0
  %86 = vmatprep.subr.bf16.mxu0 0
  %87 = vmatpush1.bf16.msra.mxu0 %v70
  %88 = vmatprep.subr.bf16.mxu0 0
  %89 = vmatpush2.bf16.msra.mxu0 0
  %90 = vmatprep.subr.bf16.mxu0 0
  %91 = vmatpush2.bf16.msra.mxu0 0
  %92 = vmatprep.subr.bf16.mxu0 0
  %93 = vmatpush2.bf16.msra.mxu0 0
  %94 = vmatprep.subr.bf16.mxu0 0
  %95 = vmatpush2.bf16.msra.mxu0 0
  %96 = vmatprep.subr.bf16.mxu0 0
  %97 = vmatpush2.bf16.msra.mxu0 0
  %98 = vmatprep.subr.bf16.mxu0 0
  %99 = vmatpush2.bf16.msra.mxu0 0
  %100 = vmatprep.subr.bf16.mxu0 0
  %101 = vmatpush2.bf16.msra.mxu0 0
  %102 = vmatprep.subr.bf16.mxu0 0
  %103 = vmatpush2.bf16.msra.mxu0 0
  %104 = vmatprep.mubr.bf16.mxu0 0
  %105 = vmatmul.mubr.bf16.gmra.mxu0 %v66
  %v106 = vpop.f32.mrf.mxu0
  %v107 = vadd.f32 0.0, %v106
  %v108 = vpop.f32.mrf.mxu0
  %v109 = vpop.f32.mrf.mxu0
  %v110 = vpop.f32.mrf.mxu0
  %111 = vdwg.mxu0
  %v113 = vsel %vm56, %v64, 0
  %v116 = vsel %vm68, %v37, 0
  %118 = vmatprep.subr.bf16.mxu0 0
  %119 = vmatpush1.bf16.msra.mxu0 0
  %120 = vmatprep.subr.bf16.mxu0 0
  %121 = vmatpush1.bf16.msra.mxu0 0
  %122 = vmatprep.subr.bf16.mxu0 0
  %123 = vmatpush1.bf16.msra.mxu0 0
  %124 = vmatprep.subr.bf16.mxu0 0
  %125 = vmatpush1.bf16.msra.mxu0 0
  %126 = vmatprep.subr.bf16.mxu0 0
  %127 = vmatpush1.bf16.msra.mxu0 0
  %128 = vmatprep.subr.bf16.mxu0 0
  %129 = vmatpush1.bf16.msra.mxu0 0
  %130 = vmatprep.subr.bf16.mxu0 0
  %131 = vmatpush1.bf16.msra.mxu0 0
  %132 = vmatprep.subr.bf16.mxu0 0
  %133 = vmatpush1.bf16.msra.mxu0 %v116
  %134 = vmatprep.subr.bf16.mxu0 0
  %135 = vmatpush2.bf16.msra.mxu0 0
  %136 = vmatprep.subr.bf16.mxu0 0
  %137 = vmatpush2.bf16.msra.mxu0 0
  %138 = vmatprep.subr.bf16.mxu0 0
  %139 = vmatpush2.bf16.msra.mxu0 0
  %140 = vmatprep.subr.bf16.mxu0 0
  %141 = vmatpush2.bf16.msra.mxu0 0
  %142 = vmatprep.subr.bf16.mxu0 0
  %143 = vmatpush2.bf16.msra.mxu0 0
  %144 = vmatprep.subr.bf16.mxu0 0
  %145 = vmatpush2.bf16.msra.mxu0 0
  %146 = vmatprep.subr.bf16.mxu0 0
  %147 = vmatpush2.bf16.msra.mxu0 0
  %148 = vmatprep.subr.bf16.mxu0 0
  %149 = vmatpush2.bf16.msra.mxu0 0
  %150 = vmatprep.mubr.bf16.mxu0 0
  %151 = vmatmul.mubr.bf16.gmra.mxu0 %v113
  %v152 = vpop.f32.mrf.mxu0
  %v153 = vadd.f32 0.0, %v152
  %v154 = vpop.f32.mrf.mxu0
  %v155 = vpop.f32.mrf.mxu0
  %v156 = vpop.f32.mrf.mxu0
  %157 = vdwg.mxu0
  %v158 = vld [vmem:[%s3] sm:$0xff]
  %v159 = vmul.f32 %v59, %v158
  %v160 = vmul.f32 %v62, %v158
  %v161 = vsub.f32 %v107, %v159
  %v162 = vsub.f32 %v153, %v160
  %v163 = vmul.f32 %v161, %v161
  %v164 = vmul.f32 %v162, %v162
  %165 = vadd.xlane.f32.xlu0 %v163
  %v166 = vpop.xlane.xlu0 %165
  %167 = vadd.xlane.f32.xlu0 %v164
  %v168 = vpop.xlane.xlu0 %167
  %v169 = vmax.f32 %v166, 1e-24
  %v170 = vmax.f32 %v168, 1e-24
  %v171 = vrsqrt.pop %v169
  %v172 = vrsqrt.pop %v170
  %v173 = vmul.f32 %v161, %v171
  %v174 = vmul.f32 %v162, %v172
  %v175 = vpack.c.bf16 %v173, %v173
  %v176 = vpack.c.bf16 %v174, %v174
  %v177 = vld [vmem:[%s4] sm:$0xf]
  %v178 = vld [vmem:[%s4 + $0x4] sm:$0xf]
  %v179 = vld [vmem:[%s4 + $0x8] sm:$0xf]
  %v180 = vld [vmem:[%s4 + $0xc] sm:$0xf]
  %v181 = vld [vmem:[%s4 + $0x10] sm:$0xf]
  %v182 = vld [vmem:[%s4 + $0x14] sm:$0xf]
  %v183 = vld [vmem:[%s4 + $0x18] sm:$0xf]
  %v184 = vld [vmem:[%s4 + $0x1c] sm:$0xf]
  %v185 = vld [vmem:[%s4 + $0x20] sm:$0xf]
  %v186 = vld [vmem:[%s4 + $0x24] sm:$0xf]
  %v187 = vld [vmem:[%s4 + $0x28] sm:$0xf]
  %v188 = vld [vmem:[%s4 + $0x2c] sm:$0xf]
  %v189 = vld [vmem:[%s4 + $0x30] sm:$0xf]
  %v190 = vld [vmem:[%s4 + $0x34] sm:$0xf]
  %v191 = vld [vmem:[%s4 + $0x38] sm:$0xf]
  %v192 = vld [vmem:[%s4 + $0x3c] sm:$0xf]
  %s193 = scalar_lea.vmem %s4, 64
  %v194 = vld [vmem:[%s193] sm:$0xf]
  %v195 = vld [vmem:[%s193 + $0x4] sm:$0xf]
  %v196 = vld [vmem:[%s193 + $0x8] sm:$0xf]
  %v197 = vld [vmem:[%s193 + $0xc] sm:$0xf]
  %v198 = vld [vmem:[%s193 + $0x10] sm:$0xf]
  %v199 = vld [vmem:[%s193 + $0x14] sm:$0xf]
  %v200 = vld [vmem:[%s193 + $0x18] sm:$0xf]
  %v201 = vld [vmem:[%s193 + $0x1c] sm:$0xf]
  %v202 = vld [vmem:[%s193 + $0x20] sm:$0xf]
  %v203 = vld [vmem:[%s193 + $0x24] sm:$0xf]
  %v204 = vld [vmem:[%s193 + $0x28] sm:$0xf]
  %v205 = vld [vmem:[%s193 + $0x2c] sm:$0xf]
  %v206 = vld [vmem:[%s193 + $0x30] sm:$0xf]
  %v207 = vld [vmem:[%s193 + $0x34] sm:$0xf]
  %v208 = vld [vmem:[%s193 + $0x38] sm:$0xf]
  %v209 = vld [vmem:[%s193 + $0x3c] sm:$0xf]
  %v212 = vunpack.c.l.b16 %v175
  %v213 = vunpack.c.l.b16 %v176
  %v214 = vrot.slane %v212, 1
  %vm215 = vcmask 1041409
  %v216 = vsel %vm215, %v213, %v214
  %v217 = vpack.c.b16 %v216, %v216
  %v235 = vunpack.c.l.b16 %v194
  %v236 = vunpack.c.l.b16 %v195
  %v237 = vunpack.c.l.b16 %v196
  %v238 = vunpack.c.l.b16 %v197
  %v239 = vunpack.c.l.b16 %v198
  %v240 = vunpack.c.l.b16 %v199
  %v241 = vunpack.c.l.b16 %v200
  %v242 = vunpack.c.l.b16 %v201
  %v243 = vunpack.c.l.b16 %v202
  %v244 = vunpack.c.l.b16 %v203
  %v245 = vunpack.c.l.b16 %v204
  %v246 = vunpack.c.l.b16 %v205
  %v247 = vunpack.c.l.b16 %v206
  %v248 = vunpack.c.l.b16 %v207
  %v249 = vunpack.c.l.b16 %v208
  %v250 = vunpack.c.l.b16 %v209
  %v251 = vpack.c.b16 %v236, %v235
  %v252 = vpack.c.b16 %v238, %v237
  %v253 = vpack.c.b16 %v240, %v239
  %v254 = vpack.c.b16 %v242, %v241
  %v255 = vpack.c.b16 %v244, %v243
  %v256 = vpack.c.b16 %v246, %v245
  %v257 = vpack.c.b16 %v248, %v247
  %v258 = vpack.c.b16 %v250, %v249
  %267 = vmatprep.subr.bf16.mxu0 0
  %268 = vmatpush1.bf16.msra.mxu0 %v258
  %269 = vmatprep.subr.bf16.mxu0 0
  %270 = vmatpush1.bf16.msra.mxu0 %v257
  %271 = vmatprep.subr.bf16.mxu0 0
  %272 = vmatpush1.bf16.msra.mxu0 %v256
  %273 = vmatprep.subr.bf16.mxu0 0
  %274 = vmatpush1.bf16.msra.mxu0 %v255
  %275 = vmatprep.subr.bf16.mxu0 0
  %276 = vmatpush1.bf16.msra.mxu0 %v254
  %277 = vmatprep.subr.bf16.mxu0 0
  %278 = vmatpush1.bf16.msra.mxu0 %v253
  %279 = vmatprep.subr.bf16.mxu0 0
  %280 = vmatpush1.bf16.msra.mxu0 %v252
  %281 = vmatprep.subr.bf16.mxu0 0
  %282 = vmatpush1.bf16.msra.mxu0 %v251
  %283 = vmatprep.subr.bf16.mxu0 0
  %284 = vmatpush2.bf16.msra.mxu0 0
  %285 = vmatprep.subr.bf16.mxu0 0
  %286 = vmatpush2.bf16.msra.mxu0 0
  %287 = vmatprep.subr.bf16.mxu0 0
  %288 = vmatpush2.bf16.msra.mxu0 0
  %289 = vmatprep.subr.bf16.mxu0 0
  %290 = vmatpush2.bf16.msra.mxu0 0
  %291 = vmatprep.subr.bf16.mxu0 0
  %292 = vmatpush2.bf16.msra.mxu0 0
  %293 = vmatprep.subr.bf16.mxu0 0
  %294 = vmatpush2.bf16.msra.mxu0 0
  %295 = vmatprep.subr.bf16.mxu0 0
  %296 = vmatpush2.bf16.msra.mxu0 0
  %297 = vmatprep.subr.bf16.mxu0 0
  %298 = vmatpush2.bf16.msra.mxu0 0
  %299 = vmatprep.mubr.bf16.mxu0 0
  %300 = vmatmul.mubr.bf16.gmra.mxu0 %v217
  %v301 = vpop.f32.mrf.mxu0
  %v302 = vadd.f32 0.0, %v301
  %v303 = vpop.f32.mrf.mxu0
  %v304 = vpop.f32.mrf.mxu0
  %v305 = vpop.f32.mrf.mxu0
  %306 = vdwg.mxu0
  %v307 = vrot.slane %v213, 7
  %v308 = vsel %vm215, %v307, %v212
  %v309 = vpack.c.b16 %v308, %v308
  %v327 = vunpack.c.l.b16 %v177
  %v328 = vunpack.c.l.b16 %v178
  %v329 = vunpack.c.l.b16 %v179
  %v330 = vunpack.c.l.b16 %v180
  %v331 = vunpack.c.l.b16 %v181
  %v332 = vunpack.c.l.b16 %v182
  %v333 = vunpack.c.l.b16 %v183
  %v334 = vunpack.c.l.b16 %v184
  %v335 = vunpack.c.l.b16 %v185
  %v336 = vunpack.c.l.b16 %v186
  %v337 = vunpack.c.l.b16 %v187
  %v338 = vunpack.c.l.b16 %v188
  %v339 = vunpack.c.l.b16 %v189
  %v340 = vunpack.c.l.b16 %v190
  %v341 = vunpack.c.l.b16 %v191
  %v342 = vunpack.c.l.b16 %v192
  %v343 = vpack.c.b16 %v328, %v327
  %v344 = vpack.c.b16 %v330, %v329
  %v345 = vpack.c.b16 %v332, %v331
  %v346 = vpack.c.b16 %v334, %v333
  %v347 = vpack.c.b16 %v336, %v335
  %v348 = vpack.c.b16 %v338, %v337
  %v349 = vpack.c.b16 %v340, %v339
  %v350 = vpack.c.b16 %v342, %v341
  %359 = vmatprep.subr.bf16.mxu0 0
  %360 = vmatpush1.bf16.msra.mxu0 %v350
  %361 = vmatprep.subr.bf16.mxu0 0
  %362 = vmatpush1.bf16.msra.mxu0 %v349
  %363 = vmatprep.subr.bf16.mxu0 0
  %364 = vmatpush1.bf16.msra.mxu0 %v348
  %365 = vmatprep.subr.bf16.mxu0 0
  %366 = vmatpush1.bf16.msra.mxu0 %v347
  %367 = vmatprep.subr.bf16.mxu0 0
  %368 = vmatpush1.bf16.msra.mxu0 %v346
  %369 = vmatprep.subr.bf16.mxu0 0
  %370 = vmatpush1.bf16.msra.mxu0 %v345
  %371 = vmatprep.subr.bf16.mxu0 0
  %372 = vmatpush1.bf16.msra.mxu0 %v344
  %373 = vmatprep.subr.bf16.mxu0 0
  %374 = vmatpush1.bf16.msra.mxu0 %v343
  %375 = vmatprep.subr.bf16.mxu0 0
  %376 = vmatpush2.bf16.msra.mxu0 0
  %377 = vmatprep.subr.bf16.mxu0 0
  %378 = vmatpush2.bf16.msra.mxu0 0
  %379 = vmatprep.subr.bf16.mxu0 0
  %380 = vmatpush2.bf16.msra.mxu0 0
  %381 = vmatprep.subr.bf16.mxu0 0
  %382 = vmatpush2.bf16.msra.mxu0 0
  %383 = vmatprep.subr.bf16.mxu0 0
  %384 = vmatpush2.bf16.msra.mxu0 0
  %385 = vmatprep.subr.bf16.mxu0 0
  %386 = vmatpush2.bf16.msra.mxu0 0
  %387 = vmatprep.subr.bf16.mxu0 0
  %388 = vmatpush2.bf16.msra.mxu0 0
  %389 = vmatprep.subr.bf16.mxu0 0
  %390 = vmatpush2.bf16.msra.mxu0 0
  %391 = vmatprep.mubr.bf16.mxu0 0
  %392 = vmatmul.mubr.bf16.gmra.mxu0 %v309
  %v393 = vpop.f32.mrf.mxu0
  %v394 = vadd.f32 %v302, %v393
  %v395 = vpop.f32.mrf.mxu0
  %v396 = vpop.f32.mrf.mxu0
  %v397 = vpop.f32.mrf.mxu0
  %398 = vdwg.mxu0
  %s399 = scalar_lea.vmem %s4, 128
  %v400 = vld [vmem:[%s399] sm:$0xf]
  %v401 = vld [vmem:[%s399 + $0x4] sm:$0xf]
  %v402 = vld [vmem:[%s399 + $0x8] sm:$0xf]
  %v403 = vld [vmem:[%s399 + $0xc] sm:$0xf]
  %v404 = vld [vmem:[%s399 + $0x10] sm:$0xf]
  %v405 = vld [vmem:[%s399 + $0x14] sm:$0xf]
  %v406 = vld [vmem:[%s399 + $0x18] sm:$0xf]
  %v407 = vld [vmem:[%s399 + $0x1c] sm:$0xf]
  %v408 = vld [vmem:[%s399 + $0x20] sm:$0xf]
  %v409 = vld [vmem:[%s399 + $0x24] sm:$0xf]
  %v410 = vld [vmem:[%s399 + $0x28] sm:$0xf]
  %v411 = vld [vmem:[%s399 + $0x2c] sm:$0xf]
  %v412 = vld [vmem:[%s399 + $0x30] sm:$0xf]
  %v413 = vld [vmem:[%s399 + $0x34] sm:$0xf]
  %v414 = vld [vmem:[%s399 + $0x38] sm:$0xf]
  %v415 = vld [vmem:[%s399 + $0x3c] sm:$0xf]
  %v416 = vrot.slane %v212, 2
  %v417 = vrot.slane %v213, 1
  %v418 = vsel %vm215, %v417, %v416
  %v419 = vpack.c.b16 %v418, %v418
  %v437 = vunpack.c.l.b16 %v400
  %v438 = vunpack.c.l.b16 %v401
  %v439 = vunpack.c.l.b16 %v402
  %v440 = vunpack.c.l.b16 %v403
  %v441 = vunpack.c.l.b16 %v404
  %v442 = vunpack.c.l.b16 %v405
  %v443 = vunpack.c.l.b16 %v406
  %v444 = vunpack.c.l.b16 %v407
  %v445 = vunpack.c.l.b16 %v408
  %v446 = vunpack.c.l.b16 %v409
  %v447 = vunpack.c.l.b16 %v410
  %v448 = vunpack.c.l.b16 %v411
  %v449 = vunpack.c.l.b16 %v412
  %v450 = vunpack.c.l.b16 %v413
  %v451 = vunpack.c.l.b16 %v414
  %v452 = vunpack.c.l.b16 %v415
  %v453 = vpack.c.b16 %v438, %v437
  %v454 = vpack.c.b16 %v440, %v439
  %v455 = vpack.c.b16 %v442, %v441
  %v456 = vpack.c.b16 %v444, %v443
  %v457 = vpack.c.b16 %v446, %v445
  %v458 = vpack.c.b16 %v448, %v447
  %v459 = vpack.c.b16 %v450, %v449
  %v460 = vpack.c.b16 %v452, %v451
  %469 = vmatprep.subr.bf16.mxu0 0
  %470 = vmatpush1.bf16.msra.mxu0 %v460
  %471 = vmatprep.subr.bf16.mxu0 0
  %472 = vmatpush1.bf16.msra.mxu0 %v459
  %473 = vmatprep.subr.bf16.mxu0 0
  %474 = vmatpush1.bf16.msra.mxu0 %v458
  %475 = vmatprep.subr.bf16.mxu0 0
  %476 = vmatpush1.bf16.msra.mxu0 %v457
  %477 = vmatprep.subr.bf16.mxu0 0
  %478 = vmatpush1.bf16.msra.mxu0 %v456
  %479 = vmatprep.subr.bf16.mxu0 0
  %480 = vmatpush1.bf16.msra.mxu0 %v455
  %481 = vmatprep.subr.bf16.mxu0 0
  %482 = vmatpush1.bf16.msra.mxu0 %v454
  %483 = vmatprep.subr.bf16.mxu0 0
  %484 = vmatpush1.bf16.msra.mxu0 %v453
  %485 = vmatprep.subr.bf16.mxu0 0
  %486 = vmatpush2.bf16.msra.mxu0 0
  %487 = vmatprep.subr.bf16.mxu0 0
  %488 = vmatpush2.bf16.msra.mxu0 0
  %489 = vmatprep.subr.bf16.mxu0 0
  %490 = vmatpush2.bf16.msra.mxu0 0
  %491 = vmatprep.subr.bf16.mxu0 0
  %492 = vmatpush2.bf16.msra.mxu0 0
  %493 = vmatprep.subr.bf16.mxu0 0
  %494 = vmatpush2.bf16.msra.mxu0 0
  %495 = vmatprep.subr.bf16.mxu0 0
  %496 = vmatpush2.bf16.msra.mxu0 0
  %497 = vmatprep.subr.bf16.mxu0 0
  %498 = vmatpush2.bf16.msra.mxu0 0
  %499 = vmatprep.subr.bf16.mxu0 0
  %500 = vmatpush2.bf16.msra.mxu0 0
  %501 = vmatprep.mubr.bf16.mxu0 0
  %502 = vmatmul.mubr.bf16.gmra.mxu0 %v419
  %v503 = vpop.f32.mrf.mxu0
  %v504 = vadd.f32 0.0, %v503
  %v505 = vpop.f32.mrf.mxu0
  %v506 = vpop.f32.mrf.mxu0
  %v507 = vpop.f32.mrf.mxu0
  %508 = vdwg.mxu0
  %v509 = vadd.f32 %v394, %v504
  %s510 = scalar_lea.vmem %s4, 192
  %v511 = vld [vmem:[%s510] sm:$0xf]
  %v512 = vld [vmem:[%s510 + $0x4] sm:$0xf]
  %v513 = vld [vmem:[%s510 + $0x8] sm:$0xf]
  %v514 = vld [vmem:[%s510 + $0xc] sm:$0xf]
  %v515 = vld [vmem:[%s510 + $0x10] sm:$0xf]
  %v516 = vld [vmem:[%s510 + $0x14] sm:$0xf]
  %v517 = vld [vmem:[%s510 + $0x18] sm:$0xf]
  %v518 = vld [vmem:[%s510 + $0x1c] sm:$0xf]
  %v519 = vld [vmem:[%s510 + $0x20] sm:$0xf]
  %v520 = vld [vmem:[%s510 + $0x24] sm:$0xf]
  %v521 = vld [vmem:[%s510 + $0x28] sm:$0xf]
  %v522 = vld [vmem:[%s510 + $0x2c] sm:$0xf]
  %v523 = vld [vmem:[%s510 + $0x30] sm:$0xf]
  %v524 = vld [vmem:[%s510 + $0x34] sm:$0xf]
  %v525 = vld [vmem:[%s510 + $0x38] sm:$0xf]
  %v526 = vld [vmem:[%s510 + $0x3c] sm:$0xf]
  %v527 = vrot.slane %v212, 3
  %v528 = vrot.slane %v213, 2
  %v529 = vsel %vm215, %v528, %v527
  %v530 = vpack.c.b16 %v529, %v529
  %v548 = vunpack.c.l.b16 %v511
  %v549 = vunpack.c.l.b16 %v512
  %v550 = vunpack.c.l.b16 %v513
  %v551 = vunpack.c.l.b16 %v514
  %v552 = vunpack.c.l.b16 %v515
  %v553 = vunpack.c.l.b16 %v516
  %v554 = vunpack.c.l.b16 %v517
  %v555 = vunpack.c.l.b16 %v518
  %v556 = vunpack.c.l.b16 %v519
  %v557 = vunpack.c.l.b16 %v520
  %v558 = vunpack.c.l.b16 %v521
  %v559 = vunpack.c.l.b16 %v522
  %v560 = vunpack.c.l.b16 %v523
  %v561 = vunpack.c.l.b16 %v524
  %v562 = vunpack.c.l.b16 %v525
  %v563 = vunpack.c.l.b16 %v526
  %v564 = vpack.c.b16 %v549, %v548
  %v565 = vpack.c.b16 %v551, %v550
  %v566 = vpack.c.b16 %v553, %v552
  %v567 = vpack.c.b16 %v555, %v554
  %v568 = vpack.c.b16 %v557, %v556
  %v569 = vpack.c.b16 %v559, %v558
  %v570 = vpack.c.b16 %v561, %v560
  %v571 = vpack.c.b16 %v563, %v562
  %580 = vmatprep.subr.bf16.mxu0 0
  %581 = vmatpush1.bf16.msra.mxu0 %v571
  %582 = vmatprep.subr.bf16.mxu0 0
  %583 = vmatpush1.bf16.msra.mxu0 %v570
  %584 = vmatprep.subr.bf16.mxu0 0
  %585 = vmatpush1.bf16.msra.mxu0 %v569
  %586 = vmatprep.subr.bf16.mxu0 0
  %587 = vmatpush1.bf16.msra.mxu0 %v568
  %588 = vmatprep.subr.bf16.mxu0 0
  %589 = vmatpush1.bf16.msra.mxu0 %v567
  %590 = vmatprep.subr.bf16.mxu0 0
  %591 = vmatpush1.bf16.msra.mxu0 %v566
  %592 = vmatprep.subr.bf16.mxu0 0
  %593 = vmatpush1.bf16.msra.mxu0 %v565
  %594 = vmatprep.subr.bf16.mxu0 0
  %595 = vmatpush1.bf16.msra.mxu0 %v564
  %596 = vmatprep.subr.bf16.mxu0 0
  %597 = vmatpush2.bf16.msra.mxu0 0
  %598 = vmatprep.subr.bf16.mxu0 0
  %599 = vmatpush2.bf16.msra.mxu0 0
  %600 = vmatprep.subr.bf16.mxu0 0
  %601 = vmatpush2.bf16.msra.mxu0 0
  %602 = vmatprep.subr.bf16.mxu0 0
  %603 = vmatpush2.bf16.msra.mxu0 0
  %604 = vmatprep.subr.bf16.mxu0 0
  %605 = vmatpush2.bf16.msra.mxu0 0
  %606 = vmatprep.subr.bf16.mxu0 0
  %607 = vmatpush2.bf16.msra.mxu0 0
  %608 = vmatprep.subr.bf16.mxu0 0
  %609 = vmatpush2.bf16.msra.mxu0 0
  %610 = vmatprep.subr.bf16.mxu0 0
  %611 = vmatpush2.bf16.msra.mxu0 0
  %612 = vmatprep.mubr.bf16.mxu0 0
  %613 = vmatmul.mubr.bf16.gmra.mxu0 %v530
  %v614 = vpop.f32.mrf.mxu0
  %v615 = vadd.f32 0.0, %v614
  %v616 = vpop.f32.mrf.mxu0
  %v617 = vpop.f32.mrf.mxu0
  %v618 = vpop.f32.mrf.mxu0
  %619 = vdwg.mxu0
  %v620 = vadd.f32 %v509, %v615
  %s621 = scalar_lea.vmem %s4, 256
  %v622 = vld [vmem:[%s621] sm:$0xf]
  %v623 = vld [vmem:[%s621 + $0x4] sm:$0xf]
  %v624 = vld [vmem:[%s621 + $0x8] sm:$0xf]
  %v625 = vld [vmem:[%s621 + $0xc] sm:$0xf]
  %v626 = vld [vmem:[%s621 + $0x10] sm:$0xf]
  %v627 = vld [vmem:[%s621 + $0x14] sm:$0xf]
  %v628 = vld [vmem:[%s621 + $0x18] sm:$0xf]
  %v629 = vld [vmem:[%s621 + $0x1c] sm:$0xf]
  %v630 = vld [vmem:[%s621 + $0x20] sm:$0xf]
  %v631 = vld [vmem:[%s621 + $0x24] sm:$0xf]
  %v632 = vld [vmem:[%s621 + $0x28] sm:$0xf]
  %v633 = vld [vmem:[%s621 + $0x2c] sm:$0xf]
  %v634 = vld [vmem:[%s621 + $0x30] sm:$0xf]
  %v635 = vld [vmem:[%s621 + $0x34] sm:$0xf]
  %v636 = vld [vmem:[%s621 + $0x38] sm:$0xf]
  %v637 = vld [vmem:[%s621 + $0x3c] sm:$0xf]
  %v638 = vrot.slane %v212, 4
  %v639 = vrot.slane %v213, 3
  %v640 = vsel %vm215, %v639, %v638
  %v641 = vpack.c.b16 %v640, %v640
  %v659 = vunpack.c.l.b16 %v622
  %v660 = vunpack.c.l.b16 %v623
  %v661 = vunpack.c.l.b16 %v624
  %v662 = vunpack.c.l.b16 %v625
  %v663 = vunpack.c.l.b16 %v626
  %v664 = vunpack.c.l.b16 %v627
  %v665 = vunpack.c.l.b16 %v628
  %v666 = vunpack.c.l.b16 %v629
  %v667 = vunpack.c.l.b16 %v630
  %v668 = vunpack.c.l.b16 %v631
  %v669 = vunpack.c.l.b16 %v632
  %v670 = vunpack.c.l.b16 %v633
  %v671 = vunpack.c.l.b16 %v634
  %v672 = vunpack.c.l.b16 %v635
  %v673 = vunpack.c.l.b16 %v636
  %v674 = vunpack.c.l.b16 %v637
  %v675 = vpack.c.b16 %v660, %v659
  %v676 = vpack.c.b16 %v662, %v661
  %v677 = vpack.c.b16 %v664, %v663
  %v678 = vpack.c.b16 %v666, %v665
  %v679 = vpack.c.b16 %v668, %v667
  %v680 = vpack.c.b16 %v670, %v669
  %v681 = vpack.c.b16 %v672, %v671
  %v682 = vpack.c.b16 %v674, %v673
  %691 = vmatprep.subr.bf16.mxu0 0
  %692 = vmatpush1.bf16.msra.mxu0 %v682
  %693 = vmatprep.subr.bf16.mxu0 0
  %694 = vmatpush1.bf16.msra.mxu0 %v681
  %695 = vmatprep.subr.bf16.mxu0 0
  %696 = vmatpush1.bf16.msra.mxu0 %v680
  %697 = vmatprep.subr.bf16.mxu0 0
  %698 = vmatpush1.bf16.msra.mxu0 %v679
  %699 = vmatprep.subr.bf16.mxu0 0
  %700 = vmatpush1.bf16.msra.mxu0 %v678
  %701 = vmatprep.subr.bf16.mxu0 0
  %702 = vmatpush1.bf16.msra.mxu0 %v677
  %703 = vmatprep.subr.bf16.mxu0 0
  %704 = vmatpush1.bf16.msra.mxu0 %v676
  %705 = vmatprep.subr.bf16.mxu0 0
  %706 = vmatpush1.bf16.msra.mxu0 %v675
  %707 = vmatprep.subr.bf16.mxu0 0
  %708 = vmatpush2.bf16.msra.mxu0 0
  %709 = vmatprep.subr.bf16.mxu0 0
  %710 = vmatpush2.bf16.msra.mxu0 0
  %711 = vmatprep.subr.bf16.mxu0 0
  %712 = vmatpush2.bf16.msra.mxu0 0
  %713 = vmatprep.subr.bf16.mxu0 0
  %714 = vmatpush2.bf16.msra.mxu0 0
  %715 = vmatprep.subr.bf16.mxu0 0
  %716 = vmatpush2.bf16.msra.mxu0 0
  %717 = vmatprep.subr.bf16.mxu0 0
  %718 = vmatpush2.bf16.msra.mxu0 0
  %719 = vmatprep.subr.bf16.mxu0 0
  %720 = vmatpush2.bf16.msra.mxu0 0
  %721 = vmatprep.subr.bf16.mxu0 0
  %722 = vmatpush2.bf16.msra.mxu0 0
  %723 = vmatprep.mubr.bf16.mxu0 0
  %724 = vmatmul.mubr.bf16.gmra.mxu0 %v641
  %v725 = vpop.f32.mrf.mxu0
  %v726 = vadd.f32 0.0, %v725
  %v727 = vpop.f32.mrf.mxu0
  %v728 = vpop.f32.mrf.mxu0
  %v729 = vpop.f32.mrf.mxu0
  %730 = vdwg.mxu0
  %v731 = vadd.f32 %v620, %v726
  %s732 = scalar_lea.vmem %s4, 320
  %v733 = vld [vmem:[%s732] sm:$0xf]
  %v734 = vld [vmem:[%s732 + $0x4] sm:$0xf]
  %v735 = vld [vmem:[%s732 + $0x8] sm:$0xf]
  %v736 = vld [vmem:[%s732 + $0xc] sm:$0xf]
  %v737 = vld [vmem:[%s732 + $0x10] sm:$0xf]
  %v738 = vld [vmem:[%s732 + $0x14] sm:$0xf]
  %v739 = vld [vmem:[%s732 + $0x18] sm:$0xf]
  %v740 = vld [vmem:[%s732 + $0x1c] sm:$0xf]
  %v741 = vld [vmem:[%s732 + $0x20] sm:$0xf]
  %v742 = vld [vmem:[%s732 + $0x24] sm:$0xf]
  %v743 = vld [vmem:[%s732 + $0x28] sm:$0xf]
  %v744 = vld [vmem:[%s732 + $0x2c] sm:$0xf]
  %v745 = vld [vmem:[%s732 + $0x30] sm:$0xf]
  %v746 = vld [vmem:[%s732 + $0x34] sm:$0xf]
  %v747 = vld [vmem:[%s732 + $0x38] sm:$0xf]
  %v748 = vld [vmem:[%s732 + $0x3c] sm:$0xf]
  %v749 = vrot.slane %v212, 5
  %v750 = vrot.slane %v213, 4
  %v751 = vsel %vm215, %v750, %v749
  %v752 = vpack.c.b16 %v751, %v751
  %v770 = vunpack.c.l.b16 %v733
  %v771 = vunpack.c.l.b16 %v734
  %v772 = vunpack.c.l.b16 %v735
  %v773 = vunpack.c.l.b16 %v736
  %v774 = vunpack.c.l.b16 %v737
  %v775 = vunpack.c.l.b16 %v738
  %v776 = vunpack.c.l.b16 %v739
  %v777 = vunpack.c.l.b16 %v740
  %v778 = vunpack.c.l.b16 %v741
  %v779 = vunpack.c.l.b16 %v742
  %v780 = vunpack.c.l.b16 %v743
  %v781 = vunpack.c.l.b16 %v744
  %v782 = vunpack.c.l.b16 %v745
  %v783 = vunpack.c.l.b16 %v746
  %v784 = vunpack.c.l.b16 %v747
  %v785 = vunpack.c.l.b16 %v748
  %v786 = vpack.c.b16 %v771, %v770
  %v787 = vpack.c.b16 %v773, %v772
  %v788 = vpack.c.b16 %v775, %v774
  %v789 = vpack.c.b16 %v777, %v776
  %v790 = vpack.c.b16 %v779, %v778
  %v791 = vpack.c.b16 %v781, %v780
  %v792 = vpack.c.b16 %v783, %v782
  %v793 = vpack.c.b16 %v785, %v784
  %802 = vmatprep.subr.bf16.mxu0 0
  %803 = vmatpush1.bf16.msra.mxu0 %v793
  %804 = vmatprep.subr.bf16.mxu0 0
  %805 = vmatpush1.bf16.msra.mxu0 %v792
  %806 = vmatprep.subr.bf16.mxu0 0
  %807 = vmatpush1.bf16.msra.mxu0 %v791
  %808 = vmatprep.subr.bf16.mxu0 0
  %809 = vmatpush1.bf16.msra.mxu0 %v790
  %810 = vmatprep.subr.bf16.mxu0 0
  %811 = vmatpush1.bf16.msra.mxu0 %v789
  %812 = vmatprep.subr.bf16.mxu0 0
  %813 = vmatpush1.bf16.msra.mxu0 %v788
  %814 = vmatprep.subr.bf16.mxu0 0
  %815 = vmatpush1.bf16.msra.mxu0 %v787
  %816 = vmatprep.subr.bf16.mxu0 0
  %817 = vmatpush1.bf16.msra.mxu0 %v786
  %818 = vmatprep.subr.bf16.mxu0 0
  %819 = vmatpush2.bf16.msra.mxu0 0
  %820 = vmatprep.subr.bf16.mxu0 0
  %821 = vmatpush2.bf16.msra.mxu0 0
  %822 = vmatprep.subr.bf16.mxu0 0
  %823 = vmatpush2.bf16.msra.mxu0 0
  %824 = vmatprep.subr.bf16.mxu0 0
  %825 = vmatpush2.bf16.msra.mxu0 0
  %826 = vmatprep.subr.bf16.mxu0 0
  %827 = vmatpush2.bf16.msra.mxu0 0
  %828 = vmatprep.subr.bf16.mxu0 0
  %829 = vmatpush2.bf16.msra.mxu0 0
  %830 = vmatprep.subr.bf16.mxu0 0
  %831 = vmatpush2.bf16.msra.mxu0 0
  %832 = vmatprep.subr.bf16.mxu0 0
  %833 = vmatpush2.bf16.msra.mxu0 0
  %834 = vmatprep.mubr.bf16.mxu0 0
  %835 = vmatmul.mubr.bf16.gmra.mxu0 %v752
  %v836 = vpop.f32.mrf.mxu0
  %v837 = vadd.f32 0.0, %v836
  %v838 = vpop.f32.mrf.mxu0
  %v839 = vpop.f32.mrf.mxu0
  %v840 = vpop.f32.mrf.mxu0
  %841 = vdwg.mxu0
  %v842 = vadd.f32 %v731, %v837
  %s843 = scalar_lea.vmem %s4, 384
  %v844 = vld [vmem:[%s843] sm:$0xf]
  %v845 = vld [vmem:[%s843 + $0x4] sm:$0xf]
  %v846 = vld [vmem:[%s843 + $0x8] sm:$0xf]
  %v847 = vld [vmem:[%s843 + $0xc] sm:$0xf]
  %v848 = vld [vmem:[%s843 + $0x10] sm:$0xf]
  %v849 = vld [vmem:[%s843 + $0x14] sm:$0xf]
  %v850 = vld [vmem:[%s843 + $0x18] sm:$0xf]
  %v851 = vld [vmem:[%s843 + $0x1c] sm:$0xf]
  %v852 = vld [vmem:[%s843 + $0x20] sm:$0xf]
  %v853 = vld [vmem:[%s843 + $0x24] sm:$0xf]
  %v854 = vld [vmem:[%s843 + $0x28] sm:$0xf]
  %v855 = vld [vmem:[%s843 + $0x2c] sm:$0xf]
  %v856 = vld [vmem:[%s843 + $0x30] sm:$0xf]
  %v857 = vld [vmem:[%s843 + $0x34] sm:$0xf]
  %v858 = vld [vmem:[%s843 + $0x38] sm:$0xf]
  %v859 = vld [vmem:[%s843 + $0x3c] sm:$0xf]
  %v860 = vrot.slane %v212, 6
  %v861 = vrot.slane %v213, 5
  %v862 = vsel %vm215, %v861, %v860
  %v863 = vpack.c.b16 %v862, %v862
  %v881 = vunpack.c.l.b16 %v844
  %v882 = vunpack.c.l.b16 %v845
  %v883 = vunpack.c.l.b16 %v846
  %v884 = vunpack.c.l.b16 %v847
  %v885 = vunpack.c.l.b16 %v848
  %v886 = vunpack.c.l.b16 %v849
  %v887 = vunpack.c.l.b16 %v850
  %v888 = vunpack.c.l.b16 %v851
  %v889 = vunpack.c.l.b16 %v852
  %v890 = vunpack.c.l.b16 %v853
  %v891 = vunpack.c.l.b16 %v854
  %v892 = vunpack.c.l.b16 %v855
  %v893 = vunpack.c.l.b16 %v856
  %v894 = vunpack.c.l.b16 %v857
  %v895 = vunpack.c.l.b16 %v858
  %v896 = vunpack.c.l.b16 %v859
  %v897 = vpack.c.b16 %v882, %v881
  %v898 = vpack.c.b16 %v884, %v883
  %v899 = vpack.c.b16 %v886, %v885
  %v900 = vpack.c.b16 %v888, %v887
  %v901 = vpack.c.b16 %v890, %v889
  %v902 = vpack.c.b16 %v892, %v891
  %v903 = vpack.c.b16 %v894, %v893
  %v904 = vpack.c.b16 %v896, %v895
  %913 = vmatprep.subr.bf16.mxu0 0
  %914 = vmatpush1.bf16.msra.mxu0 %v904
  %915 = vmatprep.subr.bf16.mxu0 0
  %916 = vmatpush1.bf16.msra.mxu0 %v903
  %917 = vmatprep.subr.bf16.mxu0 0
  %918 = vmatpush1.bf16.msra.mxu0 %v902
  %919 = vmatprep.subr.bf16.mxu0 0
  %920 = vmatpush1.bf16.msra.mxu0 %v901
  %921 = vmatprep.subr.bf16.mxu0 0
  %922 = vmatpush1.bf16.msra.mxu0 %v900
  %923 = vmatprep.subr.bf16.mxu0 0
  %924 = vmatpush1.bf16.msra.mxu0 %v899
  %925 = vmatprep.subr.bf16.mxu0 0
  %926 = vmatpush1.bf16.msra.mxu0 %v898
  %927 = vmatprep.subr.bf16.mxu0 0
  %928 = vmatpush1.bf16.msra.mxu0 %v897
  %929 = vmatprep.subr.bf16.mxu0 0
  %930 = vmatpush2.bf16.msra.mxu0 0
  %931 = vmatprep.subr.bf16.mxu0 0
  %932 = vmatpush2.bf16.msra.mxu0 0
  %933 = vmatprep.subr.bf16.mxu0 0
  %934 = vmatpush2.bf16.msra.mxu0 0
  %935 = vmatprep.subr.bf16.mxu0 0
  %936 = vmatpush2.bf16.msra.mxu0 0
  %937 = vmatprep.subr.bf16.mxu0 0
  %938 = vmatpush2.bf16.msra.mxu0 0
  %939 = vmatprep.subr.bf16.mxu0 0
  %940 = vmatpush2.bf16.msra.mxu0 0
  %941 = vmatprep.subr.bf16.mxu0 0
  %942 = vmatpush2.bf16.msra.mxu0 0
  %943 = vmatprep.subr.bf16.mxu0 0
  %944 = vmatpush2.bf16.msra.mxu0 0
  %945 = vmatprep.mubr.bf16.mxu0 0
  %946 = vmatmul.mubr.bf16.gmra.mxu0 %v863
  %v947 = vpop.f32.mrf.mxu0
  %v948 = vadd.f32 0.0, %v947
  %v949 = vpop.f32.mrf.mxu0
  %v950 = vpop.f32.mrf.mxu0
  %v951 = vpop.f32.mrf.mxu0
  %952 = vdwg.mxu0
  %v953 = vadd.f32 %v842, %v948
  %s954 = scalar_lea.vmem %s4, 448
  %v955 = vld [vmem:[%s954] sm:$0xf]
  %v956 = vld [vmem:[%s954 + $0x4] sm:$0xf]
  %v957 = vld [vmem:[%s954 + $0x8] sm:$0xf]
  %v958 = vld [vmem:[%s954 + $0xc] sm:$0xf]
  %v959 = vld [vmem:[%s954 + $0x10] sm:$0xf]
  %v960 = vld [vmem:[%s954 + $0x14] sm:$0xf]
  %v961 = vld [vmem:[%s954 + $0x18] sm:$0xf]
  %v962 = vld [vmem:[%s954 + $0x1c] sm:$0xf]
  %v963 = vld [vmem:[%s954 + $0x20] sm:$0xf]
  %v964 = vld [vmem:[%s954 + $0x24] sm:$0xf]
  %v965 = vld [vmem:[%s954 + $0x28] sm:$0xf]
  %v966 = vld [vmem:[%s954 + $0x2c] sm:$0xf]
  %v967 = vld [vmem:[%s954 + $0x30] sm:$0xf]
  %v968 = vld [vmem:[%s954 + $0x34] sm:$0xf]
  %v969 = vld [vmem:[%s954 + $0x38] sm:$0xf]
  %v970 = vld [vmem:[%s954 + $0x3c] sm:$0xf]
  %v971 = vrot.slane %v212, 7
  %v972 = vrot.slane %v213, 6
  %v973 = vsel %vm215, %v972, %v971
  %v974 = vpack.c.b16 %v973, %v973
  %v992 = vunpack.c.l.b16 %v955
  %v993 = vunpack.c.l.b16 %v956
  %v994 = vunpack.c.l.b16 %v957
  %v995 = vunpack.c.l.b16 %v958
  %v996 = vunpack.c.l.b16 %v959
  %v997 = vunpack.c.l.b16 %v960
  %v998 = vunpack.c.l.b16 %v961
  %v999 = vunpack.c.l.b16 %v962
  %v1000 = vunpack.c.l.b16 %v963
  %v1001 = vunpack.c.l.b16 %v964
  %v1002 = vunpack.c.l.b16 %v965
  %v1003 = vunpack.c.l.b16 %v966
  %v1004 = vunpack.c.l.b16 %v967
  %v1005 = vunpack.c.l.b16 %v968
  %v1006 = vunpack.c.l.b16 %v969
  %v1007 = vunpack.c.l.b16 %v970
  %v1008 = vpack.c.b16 %v993, %v992
  %v1009 = vpack.c.b16 %v995, %v994
  %v1010 = vpack.c.b16 %v997, %v996
  %v1011 = vpack.c.b16 %v999, %v998
  %v1012 = vpack.c.b16 %v1001, %v1000
  %v1013 = vpack.c.b16 %v1003, %v1002
  %v1014 = vpack.c.b16 %v1005, %v1004
  %v1015 = vpack.c.b16 %v1007, %v1006
  %1024 = vmatprep.subr.bf16.mxu0 0
  %1025 = vmatpush1.bf16.msra.mxu0 %v1015
  %1026 = vmatprep.subr.bf16.mxu0 0
  %1027 = vmatpush1.bf16.msra.mxu0 %v1014
  %1028 = vmatprep.subr.bf16.mxu0 0
  %1029 = vmatpush1.bf16.msra.mxu0 %v1013
  %1030 = vmatprep.subr.bf16.mxu0 0
  %1031 = vmatpush1.bf16.msra.mxu0 %v1012
  %1032 = vmatprep.subr.bf16.mxu0 0
  %1033 = vmatpush1.bf16.msra.mxu0 %v1011
  %1034 = vmatprep.subr.bf16.mxu0 0
  %1035 = vmatpush1.bf16.msra.mxu0 %v1010
  %1036 = vmatprep.subr.bf16.mxu0 0
  %1037 = vmatpush1.bf16.msra.mxu0 %v1009
  %1038 = vmatprep.subr.bf16.mxu0 0
  %1039 = vmatpush1.bf16.msra.mxu0 %v1008
  %1040 = vmatprep.subr.bf16.mxu0 0
  %1041 = vmatpush2.bf16.msra.mxu0 0
  %1042 = vmatprep.subr.bf16.mxu0 0
  %1043 = vmatpush2.bf16.msra.mxu0 0
  %1044 = vmatprep.subr.bf16.mxu0 0
  %1045 = vmatpush2.bf16.msra.mxu0 0
  %1046 = vmatprep.subr.bf16.mxu0 0
  %1047 = vmatpush2.bf16.msra.mxu0 0
  %1048 = vmatprep.subr.bf16.mxu0 0
  %1049 = vmatpush2.bf16.msra.mxu0 0
  %1050 = vmatprep.subr.bf16.mxu0 0
  %1051 = vmatpush2.bf16.msra.mxu0 0
  %1052 = vmatprep.subr.bf16.mxu0 0
  %1053 = vmatpush2.bf16.msra.mxu0 0
  %1054 = vmatprep.subr.bf16.mxu0 0
  %1055 = vmatpush2.bf16.msra.mxu0 0
  %1056 = vmatprep.mubr.bf16.mxu0 0
  %1057 = vmatmul.mubr.bf16.gmra.mxu0 %v974
  %v1058 = vpop.f32.mrf.mxu0
  %v1059 = vadd.f32 0.0, %v1058
  %v1060 = vpop.f32.mrf.mxu0
  %v1061 = vpop.f32.mrf.mxu0
  %v1062 = vpop.f32.mrf.mxu0
  %1063 = vdwg.mxu0
  %v1064 = vadd.f32 %v953, %v1059
  %v1065 = vld [vmem:[#allocation2] sm:$0x3]
  %v1066 = vadd.f32 %v1065, %v1064
  %vm1067 = vcmask 254976
  %1068 = vst.msk [vmem:[#allocation2] sm:$0x3] %vm1067, %v1066
  // Predicated region
  $region38: #{ghost_vlad_forward.4} parent=0 // pred_check
    %p1069 = pneg %p30
  $region39: #{ghost_vlad_forward.4} parent=0 // pred_check_branch
    %1071 = sbr.rel (%p1069) target = $region41
  $region40: #{ghost_vlad_forward.4} parent=0 // pred_region
    %v1072 = vld [vmem:[#allocation2] sm:$0x3]
    %v1073 = vld [vmem:[%s5] sm:$0x1]
    %v1075 = vlaneseq
    %v1076 = vshrl.u32 %v1075, 7
    %v1077 = vsub.s32 0, %v1076
    %v1078 = vrot.slane %v1073, %v1077
    %v1080 = vadd.f32 %v1072, %v1078
    %v1081 = vsel %vm1067, %v1080, 0.0
    %v1082 = vrot.slane %v1081, 4
    %v1083 = vadd.f32 %v1081, %v1082
    %v1084 = vrot.slane %v1083, 2
    %v1085 = vadd.f32 %v1083, %v1084
    %v1086 = vrot.slane %v1085, 1
    %v1087 = vadd.f32 %v1085, %v1086
    %v1088 = vrcp.pop 2.0
    %v1089 = vmul.f32 %v1087, %v1088
    %v1090 = vsub.f32 %v1080, %v1089
    %v1091 = vmul.f32 %v1090, %v1090
    %v1092 = vsel %vm1067, %v1091, 0.0
    %v1093 = vrot.slane %v1092, 4
    %v1094 = vadd.f32 %v1092, %v1093
    %v1095 = vrot.slane %v1094, 2
    %v1096 = vadd.f32 %v1094, %v1095
    %v1097 = vrot.slane %v1096, 1
    %v1098 = vadd.f32 %v1096, %v1097
    %v1099 = vmul.f32 %v1098, %v1088
    %v1100 = vadd.f32 %v1099, 1e-05
    %v1101 = vrsqrt.pop %v1100
    %v1102 = vmul.f32 %v1090, %v1101
    %v1103 = vld [vmem:[%s6] sm:$0x1]
    %v1105 = vlaneseq
    %v1106 = vshrl.u32 %v1105, 7
    %v1107 = vsub.s32 0, %v1106
    %v1108 = vrot.slane %v1103, %v1107
    %v1110 = vmul.f32 %v1102, %v1108
    %v1111 = vld [vmem:[%s7] sm:$0x1]
    %v1113 = vlaneseq
    %v1114 = vshrl.u32 %v1113, 7
    %v1115 = vsub.s32 0, %v1114
    %v1116 = vrot.slane %v1111, %v1115
    %v1118 = vadd.f32 %v1110, %v1116
    %v1119 = vmul.f32 %v1118, %v1118
    %v1120 = vsel %vm1067, %v1119, 0.0
    %1121 = vadd.xlane.f32.xlu0 %v1120
    %v1122 = vpop.xlane.xlu0 %1121
    %v1123 = vmax.f32 %v1122, 1e-24
    %v1124 = vrsqrt.pop %v1123
    %v1125 = vmul.f32 %v1118, %v1124
    %1126 = vst.msk [vmem:[%s8] sm:$0x3] %vm1067, %v1125
  $region41: #{ghost_vlad_forward.4} parent=0 // pred_fallthru
    _
  // Predicated region
  $region42: #{ghost_vlad_forward.4} parent=0 // pred_check
    _
  $region43: #{ghost_vlad_forward.4} parent=0 // pred_check_branch
    %1128 = sbr.rel (0) target = $region45
  $region44: #{ghost_vlad_forward.4} parent=0 // pred_region
    _
  $region45: #{ghost_vlad_forward.4} parent=0 // pred_fallthru
    _
  // Predicated region
  $region46: #{ghost_vlad_forward.4} parent=0 // pred_check
    _
  $region47: #{ghost_vlad_forward.4} parent=0 // pred_check_branch
    %1130 = sbr.rel (0) target = $region49
  $region48: #{ghost_vlad_forward.4} parent=0 // pred_region
    _
  $region49: #{ghost_vlad_forward.4} parent=0 // pred_fallthru
    _

</llo_original>
